<compile_context>
chip_gen: v7x
topology: tpu7x:2x2x1
jax: 0.10.0
libtpu: 0.0.40
codegen_flags: <defaults>
</compile_context>

<pallas_src>
import functools

import jax
import jax.numpy as jnp
from jax.experimental import pallas as pl
from jax.experimental.pallas import tpu as pltpu

_CONV1_K, _CONV1_PAD = 7, 3          # MaskedConv2d(kernel_size=7, padding=3)
_CONV2_K, _CONV2_PAD = 3, 1          # Conv2d(kernel_size=3, padding=1)


def _round_up(x, m):
    return (x + m - 1) // m * m


def _space_to_depth(x, s):
    """(N, s*Hs, s*Ws, C) -> (N, Hs, Ws, s*s*C); channel index = (p*s+q)*C + c."""
    if s == 1:
        return x
    n, hp, wp, c = x.shape
    x = x.reshape(n, hp // s, s, wp // s, s, c)
    x = jnp.transpose(x, (0, 1, 3, 2, 4, 5))
    return x.reshape(n, hp // s, wp // s, s * s * c)


# ------------------------------- fused kernel ------------------------------- #

def _fused_block_kernel(x_ref, mask_ref, s1_ref, b1_ref, w1_ref, s2_ref,
                        b2_ref, w2_ref, *rest, Ho, Wo, KA, S2C, C8, CP, Cout,
                        Mpad, h_off, w_off, equal_in_out, compute_dtype):
    if equal_in_out:
        out_ref, act1_ref, act2p_ref = rest
        wres_ref = None
    else:
        wres_ref, out_ref, act1_ref, act2p_ref = rest

    f32 = jnp.float32
    M = Ho * Wo

    # conv2 halo scratch: zero ONCE; the (Ho, Wo) interior is rewritten every
    # grid step, so the zero ring persists across the batch loop.
    @pl.when(pl.program_id(0) == 0)
    def _():
        act2p_ref[...] = jnp.zeros_like(act2p_ref)

    # ---- relu1(bn1(x)); the mask zeroes the conv1 zero-padding halo, where
    #      bn1's folded bias would otherwise make relu(bn1(0)) != 0.  (For
    #      stride > 1 the mask also depends on the space-to-depth channel
    #      group, so it is a precomputed array rather than an iota predicate.)
    xv = x_ref[0]                                            # (Hs, Ws, S2C) f32
    s1 = s1_ref[...].reshape(1, 1, S2C)
    b1 = b1_ref[...].reshape(1, 1, S2C)
    act1 = jnp.maximum(xv * s1 + b1, 0.0) * mask_ref[...]
    act1_ref[...] = act1.astype(compute_dtype)

    # ---- masked 7x7 conv1 (stride folded by space-to-depth).  Width taps are
    #      folded into K (K = KA*S2C): one patch + ONE MXU dot per row tap,
    #      value-accumulated in vregs (no VMEM accumulator RMW).
    acc = jnp.zeros((M, CP), f32)
    for a in range(KA):                        # KA = 4 or 7: short static unroll
        cols = [act1_ref[pl.ds(a, Ho), pl.ds(b, Wo), :] for b in range(KA)]
        patch = jnp.concatenate(cols, axis=-1).reshape(M, KA * S2C)
        acc = acc + jnp.dot(patch, w1_ref[a], preferred_element_type=f32)

    # ---- relu2(bn2(.)) on the real channels only (conv2's K stays unpadded).
    act2 = jnp.maximum(acc[:, :C8] * s2_ref[...] + b2_ref[...], 0.0)
    # TODO(synk): dropout (droprate > 0) not implemented (exact for droprate == 0).
    act2p_ref[pl.ds(_CONV2_PAD, Ho), pl.ds(_CONV2_PAD, Wo), :] = (
        act2.reshape(Ho, Wo, C8).astype(compute_dtype))

    # ---- 3x3 conv2 (stride 1), width taps folded into K = 3*C8.
    acc = jnp.zeros((M, CP), f32)
    for ka in range(_CONV2_K):
        cols = [act2p_ref[pl.ds(ka, Ho), pl.ds(kb, Wo), :]
                for kb in range(_CONV2_K)]
        patch = jnp.concatenate(cols, axis=-1).reshape(M, _CONV2_K * C8)
        acc = acc + jnp.dot(patch, w2_ref[ka], preferred_element_type=f32)

    # ---- residual ------------------------------------------------------------
    if equal_in_out:
        # identity: plain f32 VPU add of the ORIGINAL (pre-BN) x; never bf16.
        res = x_ref[0, pl.ds(h_off, Ho), pl.ds(w_off, Wo), :].reshape(M, S2C)
        if CP > S2C:
            res = jnp.concatenate(
                [res, jnp.zeros((M, CP - S2C), f32)], axis=-1)
        acc = acc + res
    else:
        # 1x1 stride-s shortcut on relu1(bn1(x)): one small matmul; the weight
        # rows outside the sampled s2d channel group are zero.
        res = act1_ref[pl.ds(h_off, Ho), pl.ds(w_off, Wo), :].reshape(M, S2C)
        acc = acc + jnp.dot(res, wres_ref[...], preferred_element_type=f32)

    # ---- channel-major, lane-dense store: only real channels hit HBM.
    out_t = jnp.transpose(acc)[:Cout, :]                     # (Cout, M) f32
    if Mpad == M:
        out_ref[0] = out_t
    else:
        out_ref[0, :, pl.ds(0, M)] = out_t
        out_ref[0, :, pl.ds(M, Mpad - M)] = jnp.zeros((Cout, Mpad - M), f32)


# --------------------------- one-time weight prep --------------------------- #

def prepare_block_params(params, *, stride, equal_in_out, H, W, eps=1e-5,
                         compute_dtype=jnp.float32):
    """Precompute (once) the masked / space-to-depth / K-folded conv weights,
    folded BatchNorm affines, the padding-validity mask, and static metadata."""
    s = int(stride)
    if equal_in_out:
        assert s == 1, "identity residual requires stride == 1"
    Cout, Cin = params["conv1_w"].shape[:2]
    Ho = (H + 2 * _CONV1_PAD - _CONV1_K) // s + 1
    Wo = (W + 2 * _CONV1_PAD - _CONV1_K) // s + 1
    KA = -(-_CONV1_K // s)                       # ceil(7/s) taps per spatial axis
    S2C = s * s * Cin                            # space-to-depth channel width
    CP = _round_up(Cout, 128)                    # MXU output (lane) dim
    C8 = _round_up(Cout, 8)                      # conv2 contraction dim (unpadded)
    Mpad = _round_up(Ho * Wo, 128)               # lane-dense spatial store width
    Hs, Ws = Ho + KA - 1, Wo + KA - 1
    Lh, Lw = s * Hs, s * Ws
    assert Lh - H - _CONV1_PAD >= 0 and Lw - W - _CONV1_PAD >= 0

    # Residual sampling coordinates: the shortcut / identity path reads act1/x
    # at (h_off+i, w_off+j) within channel group (pad % s, pad % s).  Static
    # check that those positions always land on real (non-halo) pixels.
    h_off = w_off = _CONV1_PAD // s
    assert s * h_off + (_CONV1_PAD % s) == _CONV1_PAD
    assert s * (Ho - 1) <= H - 1 and s * (Wo - 1) <= W - 1

    def bn_fold(p):
        g, b, m, v = p
        sc = g / jnp.sqrt(v + eps)
        return sc, b - m * sc

    sc1, bi1 = bn_fold(params["bn1"])
    sc2, bi2 = bn_fold(params["bn2"])
    s1 = jnp.tile(sc1, s * s).reshape(1, S2C)
    b1 = jnp.tile(bi1, s * s).reshape(1, S2C)
    s2 = jnp.zeros((1, C8), jnp.float32).at[0, :Cout].set(sc2)
    b2 = jnp.zeros((1, C8), jnp.float32).at[0, :Cout].set(bi2)

    # conv1: masked weight (MaskedConv2d with mask=None -> ones), repacked so
    # row tap `a` acts on the K-folded (b*S2C + s2d-channel) layout.
    w1m = params["conv1_w"] * params["conv1_mask"]            # (Cout,Cin,7,7)
    pad = KA * s - _CONV1_K
    w1p = jnp.pad(w1m, ((0, 0), (0, 0), (0, pad), (0, pad)))
    w1p = w1p.reshape(Cout, Cin, KA, s, KA, s)
    w1p = jnp.transpose(w1p, (2, 4, 3, 5, 1, 0))              # (a,b,p,q,Cin,Cout)
    w1p = w1p.reshape(KA, KA * S2C, Cout)
    w1 = jnp.zeros((KA, KA * S2C, CP), jnp.float32).at[..., :Cout].set(w1p)

    # conv2: (Cout, Cout, 3, 3) -> (3, 3*C8, CP); only the OUTPUT dim is padded
    # to 128 lanes, the contraction dim stays at C8.
    w2t = jnp.transpose(params["conv2_w"], (2, 3, 1, 0))      # (3,3,Cout,Cout)
    w2 = jnp.zeros((_CONV2_K, _CONV2_K, C8, CP),
                   jnp.float32).at[:, :, :Cout, :Cout].set(w2t)
    w2 = w2.reshape(_CONV2_K, _CONV2_K * C8, CP)

    # 1x1 shortcut weight (only when not equalInOut), lifted into the s2d
    # channel axis so the kernel needs no lane-offset slicing.
    g0 = ((_CONV1_PAD % s) * s + (_CONV1_PAD % s)) * Cin
    if equal_in_out:
        wres = None
    else:
        wsc = jnp.transpose(params["convsc_w"][:, :, 0, 0], (1, 0))
        wres = jnp.zeros((S2C, CP), jnp.float32).at[g0:g0 + Cin, :Cout].set(wsc)

    # validity mask: 1 on real pixels, 0 on the conv1 zero-padding halo
    # (bn1 would otherwise turn zero padding into relu(bias) != 0).
    ones = jnp.ones((1, H, W, Cin), jnp.float32)
    ones = jnp.pad(ones, ((0, 0), (_CONV1_PAD, Lh - H - _CONV1_PAD),
                          (_CONV1_PAD, Lw - W - _CONV1_PAD), (0, 0)))
    mask = _space_to_depth(ones, s)[0]

    cdt = compute_dtype
    arrays = dict(mask=mask, s1=s1, b1=b1, s2=s2, b2=b2,
                  w1=w1.astype(cdt), w2=w2.astype(cdt))
    if wres is not None:
        arrays["wres"] = wres.astype(cdt)
    meta = dict(stride=s, H=H, W=W, Ho=Ho, Wo=Wo, KA=KA, S2C=S2C, C8=C8,
                CP=CP, Mpad=Mpad, Hs=Hs, Ws=Ws, Cout=Cout,
                h_off=h_off, w_off=w_off,
                equal_in_out=bool(equal_in_out), compute_dtype=cdt)
    return arrays, meta


# ------------------------------ block forward ------------------------------- #

def random_basic_block20_forward(x_nchw, arrays, *, meta):
    s = meta["stride"]
    Ho, Wo, KA = meta["Ho"], meta["Wo"], meta["KA"]
    Hs, Ws, S2C = meta["Hs"], meta["Ws"], meta["S2C"]
    C8, CP, Mpad = meta["C8"], meta["CP"], meta["Mpad"]
    Cout, cdt = meta["Cout"], meta["compute_dtype"]
    equal_in_out = meta["equal_in_out"]
    N, _, H, W = x_nchw.shape
    Lh, Lw = s * Hs, s * Ws

    # layout plumbing (cheap XLA, no duplication — no HBM im2col):
    # NCHW -> NHWC, conv1 zero-padding, stride-folding space-to-depth.
    x = jnp.transpose(x_nchw, (0, 2, 3, 1)).astype(jnp.float32)
    x = jnp.pad(x, ((0, 0), (_CONV1_PAD, Lh - H - _CONV1_PAD),
                    (_CONV1_PAD, Lw - W - _CONV1_PAD), (0, 0)))
    xs = _space_to_depth(x, s)                                # (N, Hs, Ws, S2C)

    kernel = functools.partial(
        _fused_block_kernel, Ho=Ho, Wo=Wo, KA=KA, S2C=S2C, C8=C8, CP=CP,
        Cout=Cout, Mpad=Mpad, h_off=meta["h_off"], w_off=meta["w_off"],
        equal_in_out=equal_in_out, compute_dtype=cdt)

    in_specs = [
        pl.BlockSpec((1, Hs, Ws, S2C), lambda n: (n, 0, 0, 0)),   # x (s2d)
        pl.BlockSpec((Hs, Ws, S2C), lambda n: (0, 0, 0)),         # halo mask
        pl.BlockSpec((1, S2C), lambda n: (0, 0)),                 # bn1 scale
        pl.BlockSpec((1, S2C), lambda n: (0, 0)),                 # bn1 bias
        pl.BlockSpec((KA, KA * S2C, CP), lambda n: (0, 0, 0)),    # w1 (K-folded)
        pl.BlockSpec((1, C8), lambda n: (0, 0)),                  # bn2 scale
        pl.BlockSpec((1, C8), lambda n: (0, 0)),                  # bn2 bias
        pl.BlockSpec((_CONV2_K, _CONV2_K * C8, CP),
                     lambda n: (0, 0, 0)),                        # w2 (K-folded)
    ]
    operands = [xs, arrays["mask"], arrays["s1"], arrays["b1"], arrays["w1"],
                arrays["s2"], arrays["b2"], arrays["w2"]]
    if not equal_in_out:
        in_specs.append(pl.BlockSpec((S2C, CP), lambda n: (0, 0)))  # wres
        operands.append(arrays["wres"])

    out = pl.pallas_call(
        kernel,
        out_shape=jax.ShapeDtypeStruct((N, Cout, Mpad), jnp.float32),
        grid_spec=pltpu.PrefetchScalarGridSpec(
            num_scalar_prefetch=0,
            grid=(N,),
            in_specs=in_specs,
            out_specs=pl.BlockSpec((1, Cout, Mpad), lambda n: (n, 0, 0)),
            scratch_shapes=[
                pltpu.VMEM((Hs, Ws, S2C), cdt),                 # act1 (s2d)
                pltpu.VMEM((Ho + 2 * _CONV2_PAD,
                            Wo + 2 * _CONV2_PAD, C8), cdt),     # act2 + zero halo
            ],
        ),
        compiler_params=pltpu.CompilerParams(
            dimension_semantics=("parallel",),
            vmem_limit_bytes=32 * 1024 * 1024),
    )(*operands)

    # channel-major output is already NCHW after un-padding the spatial dim.
    return out[:, :, :Ho * Wo].reshape(N, Cout, Ho, Wo)


# ----------------------------- pure-JAX reference --------------------------- #

def _reference_forward(x_nchw, params, stride, equal_in_out, eps=1e-5):
    def bn(x, p):
        g, b, m, v = p
        return ((x - m[None, :, None, None])
                / jnp.sqrt(v[None, :, None, None] + eps)
                * g[None, :, None, None] + b[None, :, None, None])

    def conv(x, w, s, p):
        return jax.lax.conv_general_dilated(
            x, w, (s, s), [(p, p), (p, p)],
            dimension_numbers=("NCHW", "OIHW", "NCHW"))

    a1 = jax.nn.relu(bn(x_nchw, params["bn1"]))
    o = jax.nn.relu(bn(conv(a1, params["conv1_w"] * params["conv1_mask"],
                            stride, 3), params["bn2"]))
    o = conv(o, params["conv2_w"], 1, 1)
    if equal_in_out:
        return x_nchw + o
    return conv(a1, params["convsc_w"], stride, 0) + o


# ----------------------------------- main ------------------------------------ #

def _init_params(key, in_planes, out_planes):
    ks = jax.random.split(key, 10)
    p = {}
    p["bn1"] = (jax.random.uniform(ks[0], (in_planes,), minval=0.5, maxval=1.5),
                jax.random.normal(ks[1], (in_planes,)) * 0.1,
                jax.random.normal(ks[2], (in_planes,)) * 0.1,
                jax.random.uniform(ks[3], (in_planes,), minval=0.5, maxval=1.5))
    p["bn2"] = (jax.random.uniform(ks[4], (out_planes,), minval=0.5, maxval=1.5),
                jax.random.normal(ks[5], (out_planes,)) * 0.1,
                jax.random.normal(ks[6], (out_planes,)) * 0.1,
                jax.random.uniform(ks[7], (out_planes,), minval=0.5, maxval=1.5))
    p["conv1_w"] = jax.random.normal(ks[8], (out_planes, in_planes, 7, 7)) * 0.05
    p["conv1_mask"] = jnp.ones((out_planes, in_planes, 7, 7), jnp.float32)
    p["conv2_w"] = jax.random.normal(ks[9], (out_planes, out_planes, 3, 3)) * 0.05
    p["convsc_w"] = jax.random.normal(jax.random.fold_in(key, 99),
                                      (out_planes, in_planes, 1, 1)) * 0.1
    return jax.tree_util.tree_map(lambda a: a.astype(jnp.float32), p)


if __name__ == "__main__":
    key = jax.random.PRNGKey(0)
    H = W = 16
    configs = [
        # (in_planes, out_planes, stride)
        (4, 8, 2),   # not equalInOut: masked 7x7 stride-2 conv1 + 1x1 shortcut
        (8, 8, 1),   # equalInOut: identity residual
    ]
    for ci, (in_planes, out_planes, stride) in enumerate(configs):
        equal_in_out = in_planes == out_planes
        params = _init_params(jax.random.fold_in(key, ci), in_planes, out_planes)
        x = jax.random.normal(jax.random.fold_in(key, 100 + ci),
                              (2, in_planes, H, W), dtype=jnp.float32)
        ref = _reference_forward(x, params, stride, equal_in_out)

        # f32 MXU operands (tight check) and bf16 operands (fast path, all gens).
        for cdt, tol in ((jnp.float32, 1e-4), (jnp.bfloat16, 1e-1)):
            arrays, meta = prepare_block_params(
                params, stride=stride, equal_in_out=equal_in_out,
                H=H, W=W, compute_dtype=cdt)
            fwd = jax.jit(functools.partial(random_basic_block20_forward,
                                            meta=meta))
            out = jax.block_until_ready(fwd(x, arrays))
            assert out.shape == ref.shape, (out.shape, ref.shape)
            err = float(jnp.max(jnp.abs(out - ref)))
            assert jnp.allclose(out, ref, rtol=tol, atol=tol), (
                in_planes, out_planes, stride, str(cdt), err)

    print("KERNEL_OK")
</pallas_src>

<mosaic_0001>
module attributes {stable_mosaic.version = 11 : i64} {
  func.func @_fused_block_kernel(%arg0: i32, %arg1: memref<1x11x11x16xf32, #tpu.memory_space<vmem>>, %arg2: memref<11x11x16xf32, #tpu.memory_space<vmem>>, %arg3: memref<1x16xf32, #tpu.memory_space<vmem>>, %arg4: memref<1x16xf32, #tpu.memory_space<vmem>>, %arg5: memref<4x64x128xf32, #tpu.memory_space<vmem>>, %arg6: memref<1x8xf32, #tpu.memory_space<vmem>>, %arg7: memref<1x8xf32, #tpu.memory_space<vmem>>, %arg8: memref<3x24x128xf32, #tpu.memory_space<vmem>>, %arg9: memref<16x128xf32, #tpu.memory_space<vmem>>, %arg10: memref<1x8x128xf32, #tpu.memory_space<vmem>>, %arg11: memref<11x11x16xf32, #tpu.memory_space<vmem>>, %arg12: memref<10x10x8xf32, #tpu.memory_space<vmem>>) attributes {dimension_semantics = [#tpu.dimension_semantics<parallel>], iteration_bounds = array<i64: 2>, scalar_prefetch = 0 : i64, scratch_operands = 2 : i64, tpu.core_type = #tpu.core_type<tc>, window_params = [{transform_indices = @transform_0, window_bounds = array<i64: 1, 11, 11, 16>}, {pipeline_mode = #tpu.pipeline_mode<synchronous>, transform_indices = @transform_1, window_bounds = array<i64: 11, 11, 16>}, {pipeline_mode = #tpu.pipeline_mode<synchronous>, transform_indices = @transform_2, window_bounds = array<i64: 1, 16>}, {pipeline_mode = #tpu.pipeline_mode<synchronous>, transform_indices = @transform_3, window_bounds = array<i64: 1, 16>}, {pipeline_mode = #tpu.pipeline_mode<synchronous>, transform_indices = @transform_4, window_bounds = array<i64: 4, 64, 128>}, {pipeline_mode = #tpu.pipeline_mode<synchronous>, transform_indices = @transform_5, window_bounds = array<i64: 1, 8>}, {pipeline_mode = #tpu.pipeline_mode<synchronous>, transform_indices = @transform_6, window_bounds = array<i64: 1, 8>}, {pipeline_mode = #tpu.pipeline_mode<synchronous>, transform_indices = @transform_7, window_bounds = array<i64: 3, 24, 128>}, {pipeline_mode = #tpu.pipeline_mode<synchronous>, transform_indices = @transform_8, window_bounds = array<i64: 16, 128>}, {transform_indices = @transform_9, window_bounds = array<i64: 1, 8, 128>}]} {
    %c0_i32 = arith.constant 0 : i32
    %0 = arith.cmpi eq, %arg0, %c0_i32 : i32
    %1 = arith.extui %0 : i1 to i32
    %c0_i32_0 = arith.constant 0 : i32
    %2 = arith.cmpi ne, %1, %c0_i32_0 : i32
    scf.if %2 {
      %cst_136 = arith.constant 0.000000e+00 : f32
      %112 = vector.broadcast %cst_136 : f32 to vector<10x10x8xf32>
      %c0_137 = arith.constant 0 : index
      %c0_138 = arith.constant 0 : index
      %c0_139 = arith.constant 0 : index
      %113 = vector.load %arg12[%c0_137, %c0_138, %c0_139] : memref<10x10x8xf32, #tpu.memory_space<vmem>>, vector<10x10x8xf32>
      tpu.vector_store %arg12[%c0_137, %c0_138, %c0_139], %112 {strides = array<i32>} : memref<10x10x8xf32, #tpu.memory_space<vmem>>, vector<10x10x8xf32>,
    } else {
    }
    %c0 = arith.constant 0 : index
    %c0_1 = arith.constant 0 : index
    %c0_2 = arith.constant 0 : index
    %c0_3 = arith.constant 0 : index
    %3 = vector.load %arg1[%c0, %c0_1, %c0_2, %c0_3] : memref<1x11x11x16xf32, #tpu.memory_space<vmem>>, vector<1x11x11x16xf32>
    %4 = vector.shape_cast %3 : vector<1x11x11x16xf32> to vector<11x11x16xf32>
    %c0_4 = arith.constant 0 : index
    %c0_5 = arith.constant 0 : index
    %5 = vector.load %arg3[%c0_4, %c0_5] : memref<1x16xf32, #tpu.memory_space<vmem>>, vector<1x16xf32>
    %6 = vector.shape_cast %5 : vector<1x16xf32> to vector<1x1x16xf32>
    %c0_6 = arith.constant 0 : index
    %c0_7 = arith.constant 0 : index
    %7 = vector.load %arg4[%c0_6, %c0_7] : memref<1x16xf32, #tpu.memory_space<vmem>>, vector<1x16xf32>
    %8 = vector.shape_cast %7 : vector<1x16xf32> to vector<1x1x16xf32>
    %9 = vector.broadcast %6 : vector<1x1x16xf32> to vector<11x11x16xf32>
    %10 = arith.mulf %4, %9 : vector<11x11x16xf32>
    %11 = vector.broadcast %8 : vector<1x1x16xf32> to vector<11x11x16xf32>
    %12 = arith.addf %10, %11 : vector<11x11x16xf32>
    %cst = arith.constant 0.000000e+00 : f32
    %13 = vector.broadcast %cst : f32 to vector<11x11x16xf32>
    %14 = arith.maximumf %12, %13 : vector<11x11x16xf32>
    %c0_8 = arith.constant 0 : index
    %c0_9 = arith.constant 0 : index
    %c0_10 = arith.constant 0 : index
    %15 = vector.load %arg2[%c0_8, %c0_9, %c0_10] : memref<11x11x16xf32, #tpu.memory_space<vmem>>, vector<11x11x16xf32>
    %16 = arith.mulf %14, %15 : vector<11x11x16xf32>
    %c0_11 = arith.constant 0 : index
    %c0_12 = arith.constant 0 : index
    %c0_13 = arith.constant 0 : index
    %17 = vector.load %arg11[%c0_11, %c0_12, %c0_13] : memref<11x11x16xf32, #tpu.memory_space<vmem>>, vector<11x11x16xf32>
    tpu.vector_store %arg11[%c0_11, %c0_12, %c0_13], %16 {strides = array<i32>} : memref<11x11x16xf32, #tpu.memory_space<vmem>>, vector<11x11x16xf32>,
    %cst_14 = arith.constant 0.000000e+00 : f32
    %18 = vector.broadcast %cst_14 : f32 to vector<64x128xf32>
    %c0_15 = arith.constant 0 : index
    %c0_16 = arith.constant 0 : index
    %c0_17 = arith.constant 0 : index
    %19 = vector.load %arg11[%c0_15, %c0_16, %c0_17] : memref<11x11x16xf32, #tpu.memory_space<vmem>>, vector<8x8x16xf32>
    %c0_18 = arith.constant 0 : index
    %c1 = arith.constant 1 : index
    %c0_19 = arith.constant 0 : index
    %20 = vector.load %arg11[%c0_18, %c1, %c0_19] : memref<11x11x16xf32, #tpu.memory_space<vmem>>, vector<8x8x16xf32>
    %c0_20 = arith.constant 0 : index
    %c2 = arith.constant 2 : index
    %c0_21 = arith.constant 0 : index
    %21 = vector.load %arg11[%c0_20, %c2, %c0_21] : memref<11x11x16xf32, #tpu.memory_space<vmem>>, vector<8x8x16xf32>
    %c0_22 = arith.constant 0 : index
    %c3 = arith.constant 3 : index
    %c0_23 = arith.constant 0 : index
    %22 = vector.load %arg11[%c0_22, %c3, %c0_23] : memref<11x11x16xf32, #tpu.memory_space<vmem>>, vector<8x8x16xf32>
    %23 = tpu.concatenate %19, %20, %21, %22 in 2 : vector<8x8x16xf32>, vector<8x8x16xf32>, vector<8x8x16xf32>, vector<8x8x16xf32> -> vector<8x8x64xf32>
    %24 = vector.shape_cast %23 : vector<8x8x64xf32> to vector<64x64xf32>
    %c0_24 = arith.constant 0 : index
    %c0_25 = arith.constant 0 : index
    %c0_26 = arith.constant 0 : index
    %25 = vector.load %arg5[%c0_24, %c0_25, %c0_26] : memref<4x64x128xf32, #tpu.memory_space<vmem>>, vector<1x64x128xf32>
    %26 = vector.shape_cast %25 : vector<1x64x128xf32> to vector<64x128xf32>
    %cst_27 = arith.constant dense<0.000000e+00> : vector<64x128xf32>
    %27 = tpu.matmul %24, %26, %cst_27 {dimension_numbers = #tpu.dot_dimension_numbers<[1], [0], [0], [1], [0, 0, 1, 1], [], []>} : vector<64x64xf32>, vector<64x128xf32>, vector<64x128xf32> -> vector<64x128xf32>
    %28 = arith.addf %18, %27 : vector<64x128xf32>
    %c1_28 = arith.constant 1 : index
    %c0_29 = arith.constant 0 : index
    %c0_30 = arith.constant 0 : index
    %29 = vector.load %arg11[%c1_28, %c0_29, %c0_30] : memref<11x11x16xf32, #tpu.memory_space<vmem>>, vector<8x8x16xf32>
    %c1_31 = arith.constant 1 : index
    %c1_32 = arith.constant 1 : index
    %c0_33 = arith.constant 0 : index
    %30 = vector.load %arg11[%c1_31, %c1_32, %c0_33] : memref<11x11x16xf32, #tpu.memory_space<vmem>>, vector<8x8x16xf32>
    %c1_34 = arith.constant 1 : index
    %c2_35 = arith.constant 2 : index
    %c0_36 = arith.constant 0 : index
    %31 = vector.load %arg11[%c1_34, %c2_35, %c0_36] : memref<11x11x16xf32, #tpu.memory_space<vmem>>, vector<8x8x16xf32>
    %c1_37 = arith.constant 1 : index
    %c3_38 = arith.constant 3 : index
    %c0_39 = arith.constant 0 : index
    %32 = vector.load %arg11[%c1_37, %c3_38, %c0_39] : memref<11x11x16xf32, #tpu.memory_space<vmem>>, vector<8x8x16xf32>
    %33 = tpu.concatenate %29, %30, %31, %32 in 2 : vector<8x8x16xf32>, vector<8x8x16xf32>, vector<8x8x16xf32>, vector<8x8x16xf32> -> vector<8x8x64xf32>
    %34 = vector.shape_cast %33 : vector<8x8x64xf32> to vector<64x64xf32>
    %c1_40 = arith.constant 1 : index
    %c0_41 = arith.constant 0 : index
    %c0_42 = arith.constant 0 : index
    %35 = vector.load %arg5[%c1_40, %c0_41, %c0_42] : memref<4x64x128xf32, #tpu.memory_space<vmem>>, vector<1x64x128xf32>
    %36 = vector.shape_cast %35 : vector<1x64x128xf32> to vector<64x128xf32>
    %cst_43 = arith.constant dense<0.000000e+00> : vector<64x128xf32>
    %37 = tpu.matmul %34, %36, %cst_43 {dimension_numbers = #tpu.dot_dimension_numbers<[1], [0], [0], [1], [0, 0, 1, 1], [], []>} : vector<64x64xf32>, vector<64x128xf32>, vector<64x128xf32> -> vector<64x128xf32>
    %38 = arith.addf %28, %37 : vector<64x128xf32>
    %c2_44 = arith.constant 2 : index
    %c0_45 = arith.constant 0 : index
    %c0_46 = arith.constant 0 : index
    %39 = vector.load %arg11[%c2_44, %c0_45, %c0_46] : memref<11x11x16xf32, #tpu.memory_space<vmem>>, vector<8x8x16xf32>
    %c2_47 = arith.constant 2 : index
    %c1_48 = arith.constant 1 : index
    %c0_49 = arith.constant 0 : index
    %40 = vector.load %arg11[%c2_47, %c1_48, %c0_49] : memref<11x11x16xf32, #tpu.memory_space<vmem>>, vector<8x8x16xf32>
    %c2_50 = arith.constant 2 : index
    %c2_51 = arith.constant 2 : index
    %c0_52 = arith.constant 0 : index
    %41 = vector.load %arg11[%c2_50, %c2_51, %c0_52] : memref<11x11x16xf32, #tpu.memory_space<vmem>>, vector<8x8x16xf32>
    %c2_53 = arith.constant 2 : index
    %c3_54 = arith.constant 3 : index
    %c0_55 = arith.constant 0 : index
    %42 = vector.load %arg11[%c2_53, %c3_54, %c0_55] : memref<11x11x16xf32, #tpu.memory_space<vmem>>, vector<8x8x16xf32>
    %43 = tpu.concatenate %39, %40, %41, %42 in 2 : vector<8x8x16xf32>, vector<8x8x16xf32>, vector<8x8x16xf32>, vector<8x8x16xf32> -> vector<8x8x64xf32>
    %44 = vector.shape_cast %43 : vector<8x8x64xf32> to vector<64x64xf32>
    %c2_56 = arith.constant 2 : index
    %c0_57 = arith.constant 0 : index
    %c0_58 = arith.constant 0 : index
    %45 = vector.load %arg5[%c2_56, %c0_57, %c0_58] : memref<4x64x128xf32, #tpu.memory_space<vmem>>, vector<1x64x128xf32>
    %46 = vector.shape_cast %45 : vector<1x64x128xf32> to vector<64x128xf32>
    %cst_59 = arith.constant dense<0.000000e+00> : vector<64x128xf32>
    %47 = tpu.matmul %44, %46, %cst_59 {dimension_numbers = #tpu.dot_dimension_numbers<[1], [0], [0], [1], [0, 0, 1, 1], [], []>} : vector<64x64xf32>, vector<64x128xf32>, vector<64x128xf32> -> vector<64x128xf32>
    %48 = arith.addf %38, %47 : vector<64x128xf32>
    %c3_60 = arith.constant 3 : index
    %c0_61 = arith.constant 0 : index
    %c0_62 = arith.constant 0 : index
    %49 = vector.load %arg11[%c3_60, %c0_61, %c0_62] : memref<11x11x16xf32, #tpu.memory_space<vmem>>, vector<8x8x16xf32>
    %c3_63 = arith.constant 3 : index
    %c1_64 = arith.constant 1 : index
    %c0_65 = arith.constant 0 : index
    %50 = vector.load %arg11[%c3_63, %c1_64, %c0_65] : memref<11x11x16xf32, #tpu.memory_space<vmem>>, vector<8x8x16xf32>
    %c3_66 = arith.constant 3 : index
    %c2_67 = arith.constant 2 : index
    %c0_68 = arith.constant 0 : index
    %51 = vector.load %arg11[%c3_66, %c2_67, %c0_68] : memref<11x11x16xf32, #tpu.memory_space<vmem>>, vector<8x8x16xf32>
    %c3_69 = arith.constant 3 : index
    %c3_70 = arith.constant 3 : index
    %c0_71 = arith.constant 0 : index
    %52 = vector.load %arg11[%c3_69, %c3_70, %c0_71] : memref<11x11x16xf32, #tpu.memory_space<vmem>>, vector<8x8x16xf32>
    %53 = tpu.concatenate %49, %50, %51, %52 in 2 : vector<8x8x16xf32>, vector<8x8x16xf32>, vector<8x8x16xf32>, vector<8x8x16xf32> -> vector<8x8x64xf32>
    %54 = vector.shape_cast %53 : vector<8x8x64xf32> to vector<64x64xf32>
    %c3_72 = arith.constant 3 : index
    %c0_73 = arith.constant 0 : index
    %c0_74 = arith.constant 0 : index
    %55 = vector.load %arg5[%c3_72, %c0_73, %c0_74] : memref<4x64x128xf32, #tpu.memory_space<vmem>>, vector<1x64x128xf32>
    %56 = vector.shape_cast %55 : vector<1x64x128xf32> to vector<64x128xf32>
    %cst_75 = arith.constant dense<0.000000e+00> : vector<64x128xf32>
    %57 = tpu.matmul %54, %56, %cst_75 {dimension_numbers = #tpu.dot_dimension_numbers<[1], [0], [0], [1], [0, 0, 1, 1], [], []>} : vector<64x64xf32>, vector<64x128xf32>, vector<64x128xf32> -> vector<64x128xf32>
    %58 = arith.addf %48, %57 : vector<64x128xf32>
    %59 = vector.extract_strided_slice %58 {offsets = [0, 0], sizes = [64, 8], strides = [1, 1]} : vector<64x128xf32> to vector<64x8xf32>
    %c0_76 = arith.constant 0 : index
    %c0_77 = arith.constant 0 : index
    %60 = vector.load %arg6[%c0_76, %c0_77] : memref<1x8xf32, #tpu.memory_space<vmem>>, vector<1x8xf32>
    %61 = vector.broadcast %60 : vector<1x8xf32> to vector<64x8xf32>
    %62 = arith.mulf %59, %61 : vector<64x8xf32>
    %c0_78 = arith.constant 0 : index
    %c0_79 = arith.constant 0 : index
    %63 = vector.load %arg7[%c0_78, %c0_79] : memref<1x8xf32, #tpu.memory_space<vmem>>, vector<1x8xf32>
    %64 = vector.broadcast %63 : vector<1x8xf32> to vector<64x8xf32>
    %65 = arith.addf %62, %64 : vector<64x8xf32>
    %cst_80 = arith.constant 0.000000e+00 : f32
    %66 = vector.broadcast %cst_80 : f32 to vector<64x8xf32>
    %67 = arith.maximumf %65, %66 : vector<64x8xf32>
    %68 = vector.shape_cast %67 : vector<64x8xf32> to vector<8x8x8xf32>
    %c1_81 = arith.constant 1 : index
    %c1_82 = arith.constant 1 : index
    %c0_83 = arith.constant 0 : index
    %69 = vector.load %arg12[%c1_81, %c1_82, %c0_83] : memref<10x10x8xf32, #tpu.memory_space<vmem>>, vector<8x8x8xf32>
    tpu.vector_store %arg12[%c1_81, %c1_82, %c0_83], %68 {strides = array<i32>} : memref<10x10x8xf32, #tpu.memory_space<vmem>>, vector<8x8x8xf32>,
    %cst_84 = arith.constant 0.000000e+00 : f32
    %70 = vector.broadcast %cst_84 : f32 to vector<64x128xf32>
    %c0_85 = arith.constant 0 : index
    %c0_86 = arith.constant 0 : index
    %c0_87 = arith.constant 0 : index
    %71 = vector.load %arg12[%c0_85, %c0_86, %c0_87] : memref<10x10x8xf32, #tpu.memory_space<vmem>>, vector<8x8x8xf32>
    %c0_88 = arith.constant 0 : index
    %c1_89 = arith.constant 1 : index
    %c0_90 = arith.constant 0 : index
    %72 = vector.load %arg12[%c0_88, %c1_89, %c0_90] : memref<10x10x8xf32, #tpu.memory_space<vmem>>, vector<8x8x8xf32>
    %c0_91 = arith.constant 0 : index
    %c2_92 = arith.constant 2 : index
    %c0_93 = arith.constant 0 : index
    %73 = vector.load %arg12[%c0_91, %c2_92, %c0_93] : memref<10x10x8xf32, #tpu.memory_space<vmem>>, vector<8x8x8xf32>
    %74 = tpu.concatenate %71, %72, %73 in 2 : vector<8x8x8xf32>, vector<8x8x8xf32>, vector<8x8x8xf32> -> vector<8x8x24xf32>
    %75 = vector.shape_cast %74 : vector<8x8x24xf32> to vector<64x24xf32>
    %c0_94 = arith.constant 0 : index
    %c0_95 = arith.constant 0 : index
    %c0_96 = arith.constant 0 : index
    %76 = vector.load %arg8[%c0_94, %c0_95, %c0_96] : memref<3x24x128xf32, #tpu.memory_space<vmem>>, vector<1x24x128xf32>
    %77 = vector.shape_cast %76 : vector<1x24x128xf32> to vector<24x128xf32>
    %cst_97 = arith.constant dense<0.000000e+00> : vector<64x128xf32>
    %78 = tpu.matmul %75, %77, %cst_97 {dimension_numbers = #tpu.dot_dimension_numbers<[1], [0], [0], [1], [0, 0, 1, 1], [], []>} : vector<64x24xf32>, vector<24x128xf32>, vector<64x128xf32> -> vector<64x128xf32>
    %79 = arith.addf %70, %78 : vector<64x128xf32>
    %c1_98 = arith.constant 1 : index
    %c0_99 = arith.constant 0 : index
    %c0_100 = arith.constant 0 : index
    %80 = vector.load %arg12[%c1_98, %c0_99, %c0_100] : memref<10x10x8xf32, #tpu.memory_space<vmem>>, vector<8x8x8xf32>
    %c1_101 = arith.constant 1 : index
    %c1_102 = arith.constant 1 : index
    %c0_103 = arith.constant 0 : index
    %81 = vector.load %arg12[%c1_101, %c1_102, %c0_103] : memref<10x10x8xf32, #tpu.memory_space<vmem>>, vector<8x8x8xf32>
    %c1_104 = arith.constant 1 : index
    %c2_105 = arith.constant 2 : index
    %c0_106 = arith.constant 0 : index
    %82 = vector.load %arg12[%c1_104, %c2_105, %c0_106] : memref<10x10x8xf32, #tpu.memory_space<vmem>>, vector<8x8x8xf32>
    %83 = tpu.concatenate %80, %81, %82 in 2 : vector<8x8x8xf32>, vector<8x8x8xf32>, vector<8x8x8xf32> -> vector<8x8x24xf32>
    %84 = vector.shape_cast %83 : vector<8x8x24xf32> to vector<64x24xf32>
    %c1_107 = arith.constant 1 : index
    %c0_108 = arith.constant 0 : index
    %c0_109 = arith.constant 0 : index
    %85 = vector.load %arg8[%c1_107, %c0_108, %c0_109] : memref<3x24x128xf32, #tpu.memory_space<vmem>>, vector<1x24x128xf32>
    %86 = vector.shape_cast %85 : vector<1x24x128xf32> to vector<24x128xf32>
    %cst_110 = arith.constant dense<0.000000e+00> : vector<64x128xf32>
    %87 = tpu.matmul %84, %86, %cst_110 {dimension_numbers = #tpu.dot_dimension_numbers<[1], [0], [0], [1], [0, 0, 1, 1], [], []>} : vector<64x24xf32>, vector<24x128xf32>, vector<64x128xf32> -> vector<64x128xf32>
    %88 = arith.addf %79, %87 : vector<64x128xf32>
    %c2_111 = arith.constant 2 : index
    %c0_112 = arith.constant 0 : index
    %c0_113 = arith.constant 0 : index
    %89 = vector.load %arg12[%c2_111, %c0_112, %c0_113] : memref<10x10x8xf32, #tpu.memory_space<vmem>>, vector<8x8x8xf32>
    %c2_114 = arith.constant 2 : index
    %c1_115 = arith.constant 1 : index
    %c0_116 = arith.constant 0 : index
    %90 = vector.load %arg12[%c2_114, %c1_115, %c0_116] : memref<10x10x8xf32, #tpu.memory_space<vmem>>, vector<8x8x8xf32>
    %c2_117 = arith.constant 2 : index
    %c2_118 = arith.constant 2 : index
    %c0_119 = arith.constant 0 : index
    %91 = vector.load %arg12[%c2_117, %c2_118, %c0_119] : memref<10x10x8xf32, #tpu.memory_space<vmem>>, vector<8x8x8xf32>
    %92 = tpu.concatenate %89, %90, %91 in 2 : vector<8x8x8xf32>, vector<8x8x8xf32>, vector<8x8x8xf32> -> vector<8x8x24xf32>
    %93 = vector.shape_cast %92 : vector<8x8x24xf32> to vector<64x24xf32>
    %c2_120 = arith.constant 2 : index
    %c0_121 = arith.constant 0 : index
    %c0_122 = arith.constant 0 : index
    %94 = vector.load %arg8[%c2_120, %c0_121, %c0_122] : memref<3x24x128xf32, #tpu.memory_space<vmem>>, vector<1x24x128xf32>
    %95 = vector.shape_cast %94 : vector<1x24x128xf32> to vector<24x128xf32>
    %cst_123 = arith.constant dense<0.000000e+00> : vector<64x128xf32>
    %96 = tpu.matmul %93, %95, %cst_123 {dimension_numbers = #tpu.dot_dimension_numbers<[1], [0], [0], [1], [0, 0, 1, 1], [], []>} : vector<64x24xf32>, vector<24x128xf32>, vector<64x128xf32> -> vector<64x128xf32>
    %97 = arith.addf %88, %96 : vector<64x128xf32>
    %c1_124 = arith.constant 1 : index
    %c1_125 = arith.constant 1 : index
    %c0_126 = arith.constant 0 : index
    %98 = vector.load %arg11[%c1_124, %c1_125, %c0_126] : memref<11x11x16xf32, #tpu.memory_space<vmem>>, vector<8x8x16xf32>
    %99 = vector.shape_cast %98 : vector<8x8x16xf32> to vector<64x16xf32>
    %c0_127 = arith.constant 0 : index
    %c0_128 = arith.constant 0 : index
    %100 = vector.load %arg9[%c0_127, %c0_128] : memref<16x128xf32, #tpu.memory_space<vmem>>, vector<16x128xf32>
    %cst_129 = arith.constant dense<0.000000e+00> : vector<64x128xf32>
    %101 = tpu.matmul %99, %100, %cst_129 {dimension_numbers = #tpu.dot_dimension_numbers<[1], [0], [0], [1], [0, 0, 1, 1], [], []>} : vector<64x16xf32>, vector<16x128xf32>, vector<64x128xf32> -> vector<64x128xf32>
    %102 = arith.addf %97, %101 : vector<64x128xf32>
    %103 = tpu.transpose %102, [1, 0] : vector<64x128xf32> -> vector<128x64xf32>
    %104 = vector.extract_strided_slice %103 {offsets = [0, 0], sizes = [8, 64], strides = [1, 1]} : vector<128x64xf32> to vector<8x64xf32>
    %c0_130 = arith.constant 0 : index
    %c0_131 = arith.constant 0 : index
    %c0_132 = arith.constant 0 : index
    %105 = vector.load %arg10[%c0_130, %c0_131, %c0_132] : memref<1x8x128xf32, #tpu.memory_space<vmem>>, vector<1x8x64xf32>
    %106 = vector.shape_cast %105 : vector<1x8x64xf32> to vector<8x64xf32>
    %107 = vector.shape_cast %104 : vector<8x64xf32> to vector<1x8x64xf32>
    tpu.vector_store %arg10[%c0_130, %c0_131, %c0_132], %107 {strides = array<i32>} : memref<1x8x128xf32, #tpu.memory_space<vmem>>, vector<1x8x64xf32>,
    %cst_133 = arith.constant 0.000000e+00 : f32
    %108 = vector.broadcast %cst_133 : f32 to vector<8x64xf32>
    %c0_134 = arith.constant 0 : index
    %c0_135 = arith.constant 0 : index
    %c64 = arith.constant 64 : index
    %109 = vector.load %arg10[%c0_134, %c0_135, %c64] : memref<1x8x128xf32, #tpu.memory_space<vmem>>, vector<1x8x64xf32>
    %110 = vector.shape_cast %109 : vector<1x8x64xf32> to vector<8x64xf32>
    %111 = vector.shape_cast %108 : vector<8x64xf32> to vector<1x8x64xf32>
    tpu.vector_store %arg10[%c0_134, %c0_135, %c64], %111 {strides = array<i32>} : memref<1x8x128xf32, #tpu.memory_space<vmem>>, vector<1x8x64xf32>,
    return
  }
  func.func @transform_0(%arg0: i32) -> (i32, i32, i32, i32) {
    %c0_i32 = arith.constant 0 : i32
    %c0_i32_0 = arith.constant 0 : i32
    %c0_i32_1 = arith.constant 0 : i32
    %c0_i32_2 = arith.constant 0 : i32
    return %arg0, %c0_i32, %c0_i32_0, %c0_i32_1 : i32, i32, i32, i32
  }
  func.func @transform_1(%arg0: i32) -> (i32, i32, i32) {
    %c0_i32 = arith.constant 0 : i32
    %c0_i32_0 = arith.constant 0 : i32
    %c0_i32_1 = arith.constant 0 : i32
    %c0_i32_2 = arith.constant 0 : i32
    return %c0_i32, %c0_i32_0, %c0_i32_1 : i32, i32, i32
  }
  func.func @transform_2(%arg0: i32) -> (i32, i32) {
    %c0_i32 = arith.constant 0 : i32
    %c0_i32_0 = arith.constant 0 : i32
    %c0_i32_1 = arith.constant 0 : i32
    return %c0_i32, %c0_i32_0 : i32, i32
  }
  func.func @transform_3(%arg0: i32) -> (i32, i32) {
    %c0_i32 = arith.constant 0 : i32
    %c0_i32_0 = arith.constant 0 : i32
    %c0_i32_1 = arith.constant 0 : i32
    return %c0_i32, %c0_i32_0 : i32, i32
  }
  func.func @transform_4(%arg0: i32) -> (i32, i32, i32) {
    %c0_i32 = arith.constant 0 : i32
    %c0_i32_0 = arith.constant 0 : i32
    %c0_i32_1 = arith.constant 0 : i32
    %c0_i32_2 = arith.constant 0 : i32
    return %c0_i32, %c0_i32_0, %c0_i32_1 : i32, i32, i32
  }
  func.func @transform_5(%arg0: i32) -> (i32, i32) {
    %c0_i32 = arith.constant 0 : i32
    %c0_i32_0 = arith.constant 0 : i32
    %c0_i32_1 = arith.constant 0 : i32
    return %c0_i32, %c0_i32_0 : i32, i32
  }
  func.func @transform_6(%arg0: i32) -> (i32, i32) {
    %c0_i32 = arith.constant 0 : i32
    %c0_i32_0 = arith.constant 0 : i32
    %c0_i32_1 = arith.constant 0 : i32
    return %c0_i32, %c0_i32_0 : i32, i32
  }
  func.func @transform_7(%arg0: i32) -> (i32, i32, i32) {
    %c0_i32 = arith.constant 0 : i32
    %c0_i32_0 = arith.constant 0 : i32
    %c0_i32_1 = arith.constant 0 : i32
    %c0_i32_2 = arith.constant 0 : i32
    return %c0_i32, %c0_i32_0, %c0_i32_1 : i32, i32, i32
  }
  func.func @transform_8(%arg0: i32) -> (i32, i32) {
    %c0_i32 = arith.constant 0 : i32
    %c0_i32_0 = arith.constant 0 : i32
    %c0_i32_1 = arith.constant 0 : i32
    return %c0_i32, %c0_i32_0 : i32, i32
  }
  func.func @transform_9(%arg0: i32) -> (i32, i32, i32) {
    %c0_i32 = arith.constant 0 : i32
    %c0_i32_0 = arith.constant 0 : i32
    %c0_i32_1 = arith.constant 0 : i32
    return %arg0, %c0_i32, %c0_i32_0 : i32, i32, i32
  }
}

</mosaic_0001>

<llo_original>
// kernel: random_basic_block20_forward.1
$region0: #{random_basic_block20_forward.1}
  #allocation0 [shape = 'u32[]', space=smem, size = 0x4, offset = 0x4, fixed_abs, tag = 'smem constant byte address 0x4 - core index']
  #allocation1 [shape = 'u32[144,128]{1,0:T(1,128)}', space=vmem, size = 0x12000, scoped, tag = 'internal scratch']
  #allocation2 [shape = 'f32[11,11,16]{2,1,0:T(8,128)}', space=vmem, size = 0x16000, scoped, tag = 'scratch operand']
  #allocation3 [shape = 'f32[10,10,8]{2,1,0:T(8,128)}', space=vmem, size = 0x14000, scoped, tag = 'scratch operand']
  %s0 = inlined_call_operand.vmem [shape: f32[2,11,11,16], index: 0, kind: input, shape index: {}]
  %s1 = inlined_call_operand.vmem [shape: f32[11,11,16], index: 1, kind: input, shape index: {}]
  %s2 = inlined_call_operand.vmem [shape: f32[1,16], index: 2, kind: input, shape index: {}]
  %s3 = inlined_call_operand.vmem [shape: f32[1,16], index: 3, kind: input, shape index: {}]
  %s4 = inlined_call_operand.vmem [shape: f32[4,64,128], index: 4, kind: input, shape index: {}]
  %s5 = inlined_call_operand.vmem [shape: f32[1,8], index: 5, kind: input, shape index: {}]
  %s6 = inlined_call_operand.vmem [shape: f32[1,8], index: 6, kind: input, shape index: {}]
  %s7 = inlined_call_operand.vmem [shape: f32[3,24,128], index: 7, kind: input, shape index: {}]
  %s8 = inlined_call_operand.vmem [shape: f32[16,128], index: 8, kind: input, shape index: {}]
  %s9 = inlined_call_operand.vmem [shape: f32[2,8,128], index: 9, kind: output, shape index: {}]
  %s10 = sld [smem:[#allocation0]]
  $region73: #{random_basic_block20_forward.1} parent=0
    _
  %s12 = ssub.s32 1, %s10
  %s13 = scalar_select 0, %s12, %s10
  loop: start=0, step=1, limit=4
  $region2: #{random_basic_block20_forward.1} parent=0 // loop_pre_header
    _
  $region3: #{random_basic_block20_forward.1} parent=0 // loop_header
    %s15 = sphi 0, %s19
    %p16 = scmp.ge.s32.totalorder %s15, 4
    %s25 = sphi 0, %s27
    %s28 = sphi 0, %s25
    %s29 = sphi 0, %s28
    %s45 = sphi 0, %s29
    %s49 = sphi 0, %s49
    %s51 = sphi 0, %s49
    %s52 = sphi 0, %s51
    %s66 = sphi 0, %s52
    %s70 = sphi 0, %s70
    %s72 = sphi 0, %s70
    %s73 = sphi 0, %s72
    %s87 = sphi 0, %s73
    %s91 = sphi 0, %s91
    %s93 = sphi 0, %s91
    %s94 = sphi 0, %s93
    %s108 = sphi 0, %s94
    %s112 = sphi 0, %s112
    %s114 = sphi 0, %s112
    %s115 = sphi 0, %s114
    %s129 = sphi 0, %s115
    %s133 = sphi 0, %s133
    %s135 = sphi 0, %s133
    %s136 = sphi 0, %s135
    %s150 = sphi 0, %s136
    %s154 = sphi 0, %s154
    %s156 = sphi 0, %s154
    %s157 = sphi 0, %s156
    %s171 = sphi 0, %s157
    %s175 = sphi 0, %s175
    %s177 = sphi 0, %s175
    %s178 = sphi 0, %s177
    %s192 = sphi 0, %s178
    %s196 = sphi 0, %s196
    %s198 = sphi 0, %s196
    %s199 = sphi 0, %s198
    %s213 = sphi 0, %s199
    %s219 = sphi 0, %s221
    %s222 = sphi 0, %s219
    %s223 = sphi 0, %s222
    %s239 = sphi 0, %s223
  $region4: #{random_basic_block20_forward.1} parent=0 // loop_header_branch
    %18 = sbr.rel (%p16) target = $region8
  $region5: #{random_basic_block20_forward.1} parent=0 // loop_body
    %s20 = ssub.s32 %s15, 1
    %s21 = ssub.s32 %s15, 2
    %s22 = sadd.s32 %s15, 1
    %s23 = ssub.s32 %s15, %s22
    %p24 = scmp.eq.s32.totalorder %s23, 0
    %s26 = sadd.s32 %s25, 1
    %s27 = scalar_select %p24, %s25, %s26
    %p30 = pneg %p24
    %p31 = scmp.eq.s32.totalorder %s15, 1
    %p32 = por %p30, %p31
    %p33 = scmp.ne.s32.totalorder %s25, %s28
    %p34 = scmp.eq.s32.totalorder %s15, 0
    %p35 = por %p33, %p34
    %p36 = scmp.ne.s32.totalorder %s25, %s28
    %p37 = scmp.eq.s32.totalorder %s20, 1
    %p38 = por %p36, %p37
    %p39 = scmp.ne.s32.totalorder %s28, %s29
    %p40 = scmp.eq.s32.totalorder %s20, 0
    %p41 = por %p39, %p40
    %p42 = scmp.ne.s32.totalorder %s28, %s29
    %p43 = scmp.eq.s32.totalorder %s21, 1
    %p44 = por %p42, %p43
    %p46 = scmp.ne.s32.totalorder %s29, %s45
    %p47 = scmp.eq.s32.totalorder %s21, 0
    %p48 = por %p46, %p47
    %s50 = sadd.s32 %s49, 1
    %p53 = scmp.eq.s32.totalorder %s15, 1
    %p54 = scmp.ne.s32.totalorder %s49, %s51
    %p55 = scmp.eq.s32.totalorder %s15, 0
    %p56 = por %p54, %p55
    %p57 = scmp.ne.s32.totalorder %s49, %s51
    %p58 = scmp.eq.s32.totalorder %s20, 1
    %p59 = por %p57, %p58
    %p60 = scmp.ne.s32.totalorder %s51, %s52
    %p61 = scmp.eq.s32.totalorder %s20, 0
    %p62 = por %p60, %p61
    %p63 = scmp.ne.s32.totalorder %s51, %s52
    %p64 = scmp.eq.s32.totalorder %s21, 1
    %p65 = por %p63, %p64
    %p67 = scmp.ne.s32.totalorder %s52, %s66
    %p68 = scmp.eq.s32.totalorder %s21, 0
    %p69 = por %p67, %p68
    %s71 = sadd.s32 %s70, 1
    %p74 = scmp.eq.s32.totalorder %s15, 1
    %p75 = scmp.ne.s32.totalorder %s70, %s72
    %p76 = scmp.eq.s32.totalorder %s15, 0
    %p77 = por %p75, %p76
    %p78 = scmp.ne.s32.totalorder %s70, %s72
    %p79 = scmp.eq.s32.totalorder %s20, 1
    %p80 = por %p78, %p79
    %p81 = scmp.ne.s32.totalorder %s72, %s73
    %p82 = scmp.eq.s32.totalorder %s20, 0
    %p83 = por %p81, %p82
    %p84 = scmp.ne.s32.totalorder %s72, %s73
    %p85 = scmp.eq.s32.totalorder %s21, 1
    %p86 = por %p84, %p85
    %p88 = scmp.ne.s32.totalorder %s73, %s87
    %p89 = scmp.eq.s32.totalorder %s21, 0
    %p90 = por %p88, %p89
    %s92 = sadd.s32 %s91, 1
    %p95 = scmp.eq.s32.totalorder %s15, 1
    %p96 = scmp.ne.s32.totalorder %s91, %s93
    %p97 = scmp.eq.s32.totalorder %s15, 0
    %p98 = por %p96, %p97
    %p99 = scmp.ne.s32.totalorder %s91, %s93
    %p100 = scmp.eq.s32.totalorder %s20, 1
    %p101 = por %p99, %p100
    %p102 = scmp.ne.s32.totalorder %s93, %s94
    %p103 = scmp.eq.s32.totalorder %s20, 0
    %p104 = por %p102, %p103
    %p105 = scmp.ne.s32.totalorder %s93, %s94
    %p106 = scmp.eq.s32.totalorder %s21, 1
    %p107 = por %p105, %p106
    %p109 = scmp.ne.s32.totalorder %s94, %s108
    %p110 = scmp.eq.s32.totalorder %s21, 0
    %p111 = por %p109, %p110
    %s113 = sadd.s32 %s112, 1
    %p116 = scmp.eq.s32.totalorder %s15, 1
    %p117 = scmp.ne.s32.totalorder %s112, %s114
    %p118 = scmp.eq.s32.totalorder %s15, 0
    %p119 = por %p117, %p118
    %p120 = scmp.ne.s32.totalorder %s112, %s114
    %p121 = scmp.eq.s32.totalorder %s20, 1
    %p122 = por %p120, %p121
    %p123 = scmp.ne.s32.totalorder %s114, %s115
    %p124 = scmp.eq.s32.totalorder %s20, 0
    %p125 = por %p123, %p124
    %p126 = scmp.ne.s32.totalorder %s114, %s115
    %p127 = scmp.eq.s32.totalorder %s21, 1
    %p128 = por %p126, %p127
    %p130 = scmp.ne.s32.totalorder %s115, %s129
    %p131 = scmp.eq.s32.totalorder %s21, 0
    %p132 = por %p130, %p131
    %s134 = sadd.s32 %s133, 1
    %p137 = scmp.eq.s32.totalorder %s15, 1
    %p138 = scmp.ne.s32.totalorder %s133, %s135
    %p139 = scmp.eq.s32.totalorder %s15, 0
    %p140 = por %p138, %p139
    %p141 = scmp.ne.s32.totalorder %s133, %s135
    %p142 = scmp.eq.s32.totalorder %s20, 1
    %p143 = por %p141, %p142
    %p144 = scmp.ne.s32.totalorder %s135, %s136
    %p145 = scmp.eq.s32.totalorder %s20, 0
    %p146 = por %p144, %p145
    %p147 = scmp.ne.s32.totalorder %s135, %s136
    %p148 = scmp.eq.s32.totalorder %s21, 1
    %p149 = por %p147, %p148
    %p151 = scmp.ne.s32.totalorder %s136, %s150
    %p152 = scmp.eq.s32.totalorder %s21, 0
    %p153 = por %p151, %p152
    %s155 = sadd.s32 %s154, 1
    %p158 = scmp.eq.s32.totalorder %s15, 1
    %p159 = scmp.ne.s32.totalorder %s154, %s156
    %p160 = scmp.eq.s32.totalorder %s15, 0
    %p161 = por %p159, %p160
    %p162 = scmp.ne.s32.totalorder %s154, %s156
    %p163 = scmp.eq.s32.totalorder %s20, 1
    %p164 = por %p162, %p163
    %p165 = scmp.ne.s32.totalorder %s156, %s157
    %p166 = scmp.eq.s32.totalorder %s20, 0
    %p167 = por %p165, %p166
    %p168 = scmp.ne.s32.totalorder %s156, %s157
    %p169 = scmp.eq.s32.totalorder %s21, 1
    %p170 = por %p168, %p169
    %p172 = scmp.ne.s32.totalorder %s157, %s171
    %p173 = scmp.eq.s32.totalorder %s21, 0
    %p174 = por %p172, %p173
    %s176 = sadd.s32 %s175, 1
    %p179 = scmp.eq.s32.totalorder %s15, 1
    %p180 = scmp.ne.s32.totalorder %s175, %s177
    %p181 = scmp.eq.s32.totalorder %s15, 0
    %p182 = por %p180, %p181
    %p183 = scmp.ne.s32.totalorder %s175, %s177
    %p184 = scmp.eq.s32.totalorder %s20, 1
    %p185 = por %p183, %p184
    %p186 = scmp.ne.s32.totalorder %s177, %s178
    %p187 = scmp.eq.s32.totalorder %s20, 0
    %p188 = por %p186, %p187
    %p189 = scmp.ne.s32.totalorder %s177, %s178
    %p190 = scmp.eq.s32.totalorder %s21, 1
    %p191 = por %p189, %p190
    %p193 = scmp.ne.s32.totalorder %s178, %s192
    %p194 = scmp.eq.s32.totalorder %s21, 0
    %p195 = por %p193, %p194
    %s197 = sadd.s32 %s196, 1
    %p200 = scmp.eq.s32.totalorder %s15, 1
    %p201 = scmp.ne.s32.totalorder %s196, %s198
    %p202 = scmp.eq.s32.totalorder %s15, 0
    %p203 = por %p201, %p202
    %p204 = scmp.ne.s32.totalorder %s196, %s198
    %p205 = scmp.eq.s32.totalorder %s20, 1
    %p206 = por %p204, %p205
    %p207 = scmp.ne.s32.totalorder %s198, %s199
    %p208 = scmp.eq.s32.totalorder %s20, 0
    %p209 = por %p207, %p208
    %p210 = scmp.ne.s32.totalorder %s198, %s199
    %p211 = scmp.eq.s32.totalorder %s21, 1
    %p212 = por %p210, %p211
    %p214 = scmp.ne.s32.totalorder %s199, %s213
    %p215 = scmp.eq.s32.totalorder %s21, 0
    %p216 = por %p214, %p215
    %s217 = ssub.s32 %s15, %s22
    %p218 = scmp.eq.s32.totalorder %s217, 0
    %s220 = sadd.s32 %s219, 1
    %s221 = scalar_select %p218, %s219, %s220
    %p224 = pneg %p218
    %p225 = scmp.eq.s32.totalorder %s15, 1
    %p226 = por %p224, %p225
    %p227 = scmp.ne.s32.totalorder %s219, %s222
    %p228 = scmp.eq.s32.totalorder %s15, 0
    %p229 = por %p227, %p228
    %p230 = scmp.ne.s32.totalorder %s219, %s222
    %p231 = scmp.eq.s32.totalorder %s20, 1
    %p232 = por %p230, %p231
    %p233 = scmp.ne.s32.totalorder %s222, %s223
    %p234 = scmp.eq.s32.totalorder %s20, 0
    %p235 = por %p233, %p234
    %p236 = scmp.ne.s32.totalorder %s222, %s223
    %p237 = scmp.eq.s32.totalorder %s21, 1
    %p238 = por %p236, %p237
    %p240 = scmp.ne.s32.totalorder %s223, %s239
    %p241 = scmp.eq.s32.totalorder %s21, 0
    %p242 = por %p240, %p241
    %p243 = scmp.le.s32.totalorder 1, %s15
    %p244 = scmp.lt.s32.totalorder %s15, 3
    %p245 = pnand %p243, %p244
    %p246 = pneg %p245
    // Predicated region
    $region9: #{random_basic_block20_forward.1} parent=5 // pred_check
      _
    $region10: #{random_basic_block20_forward.1} parent=5 // pred_check_branch
      %248 = sbr.rel (%p245) target = $region12
    $region11: #{random_basic_block20_forward.1} parent=5 // pred_region
      %s249 = ssub.s32 %s15, 1
      // Predicated region
      $region13: #{random_basic_block20_forward.1} parent=11 // pred_check
        %p250 = pneg %p62
      $region14: #{random_basic_block20_forward.1} parent=11 // pred_check_branch
        %252 = sbr.rel (%p250) target = $region16
      $region15: #{random_basic_block20_forward.1} parent=11 // pred_region
        _
      $region16: #{random_basic_block20_forward.1} parent=11 // pred_fallthru
        _
      // Predicated region
      $region17: #{random_basic_block20_forward.1} parent=11 // pred_check
        %p253 = pneg %p83
      $region18: #{random_basic_block20_forward.1} parent=11 // pred_check_branch
        %255 = sbr.rel (%p253) target = $region20
      $region19: #{random_basic_block20_forward.1} parent=11 // pred_region
        _
      $region20: #{random_basic_block20_forward.1} parent=11 // pred_fallthru
        _
      // Predicated region
      $region21: #{random_basic_block20_forward.1} parent=11 // pred_check
        %p256 = pneg %p104
      $region22: #{random_basic_block20_forward.1} parent=11 // pred_check_branch
        %258 = sbr.rel (%p256) target = $region24
      $region23: #{random_basic_block20_forward.1} parent=11 // pred_region
        _
      $region24: #{random_basic_block20_forward.1} parent=11 // pred_fallthru
        _
      // Predicated region
      $region25: #{random_basic_block20_forward.1} parent=11 // pred_check
        %p259 = pneg %p125
      $region26: #{random_basic_block20_forward.1} parent=11 // pred_check_branch
        %261 = sbr.rel (%p259) target = $region28
      $region27: #{random_basic_block20_forward.1} parent=11 // pred_region
        _
      $region28: #{random_basic_block20_forward.1} parent=11 // pred_fallthru
        _
      // Predicated region
      $region29: #{random_basic_block20_forward.1} parent=11 // pred_check
        %p262 = pneg %p146
      $region30: #{random_basic_block20_forward.1} parent=11 // pred_check_branch
        %264 = sbr.rel (%p262) target = $region32
      $region31: #{random_basic_block20_forward.1} parent=11 // pred_region
        _
      $region32: #{random_basic_block20_forward.1} parent=11 // pred_fallthru
        _
      // Predicated region
      $region33: #{random_basic_block20_forward.1} parent=11 // pred_check
        %p265 = pneg %p167
      $region34: #{random_basic_block20_forward.1} parent=11 // pred_check_branch
        %267 = sbr.rel (%p265) target = $region36
      $region35: #{random_basic_block20_forward.1} parent=11 // pred_region
        _
      $region36: #{random_basic_block20_forward.1} parent=11 // pred_fallthru
        _
      // Predicated region
      $region37: #{random_basic_block20_forward.1} parent=11 // pred_check
        %p268 = pneg %p188
      $region38: #{random_basic_block20_forward.1} parent=11 // pred_check_branch
        %270 = sbr.rel (%p268) target = $region40
      $region39: #{random_basic_block20_forward.1} parent=11 // pred_region
        _
      $region40: #{random_basic_block20_forward.1} parent=11 // pred_fallthru
        _
      // Predicated region
      $region41: #{random_basic_block20_forward.1} parent=11 // pred_check
        %p271 = pneg %p209
      $region42: #{random_basic_block20_forward.1} parent=11 // pred_check_branch
        %273 = sbr.rel (%p271) target = $region44
      $region43: #{random_basic_block20_forward.1} parent=11 // pred_region
        _
      $region44: #{random_basic_block20_forward.1} parent=11 // pred_fallthru
        _
    $region12: #{random_basic_block20_forward.1} parent=5 // pred_fallthru
      _
    %p274 = scmp.lt.s32.totalorder %s15, 2
    // Predicated region
    $region45: #{random_basic_block20_forward.1} parent=5 // pred_check
      %p275 = pneg %p274
    $region46: #{random_basic_block20_forward.1} parent=5 // pred_check_branch
      %277 = sbr.rel (%p275) target = $region48
    $region47: #{random_basic_block20_forward.1} parent=5 // pred_region
      // Predicated region
      $region49: #{random_basic_block20_forward.1} parent=47 // pred_check
        %p278 = pneg %p35
      $region50: #{random_basic_block20_forward.1} parent=47 // pred_check_branch
        %280 = sbr.rel (%p278) target = $region52
      $region51: #{random_basic_block20_forward.1} parent=47 // pred_region
        %p281 = scmp.lt.s32.totalorder %s15, 1
        %s282 = scalar_select %p281, %s15, 1
        %s283 = smul.addr %s282, 22
        %s284 = smul.addr %s283, 8
        %s285 = scalar_lea.vmem %s0, %s284
      $region52: #{random_basic_block20_forward.1} parent=47 // pred_fallthru
        _
    $region48: #{random_basic_block20_forward.1} parent=5 // pred_fallthru
      _
    %p286 = scmp.le.s32.totalorder 1, %s15
    %p287 = scmp.lt.s32.totalorder %s15, 3
    %p288 = pnand %p286, %p287
    %p289 = pneg %p288
    // Predicated region
    $region53: #{random_basic_block20_forward.1} parent=5 // pred_check
      _
    $region54: #{random_basic_block20_forward.1} parent=5 // pred_check_branch
      %291 = sbr.rel (%p288) target = $region56
    $region55: #{random_basic_block20_forward.1} parent=5 // pred_region
      %s292 = ssub.s32 %s15, 1
      %p293 = scmp.lt.s32.totalorder %s20, 1
      %s294 = scalar_select %p293, %s20, 1
      %s295 = smul.addr %s294, 22
      %s296 = smul.addr %s295, 8
      %s297 = scalar_lea.vmem %s0, %s296
      %p298 = pneg %p41
      %p299 = pneg %p38
      %p300 = pneg %p62
      %p301 = pneg %p59
      %p302 = pneg %p83
      %p303 = pneg %p80
      %p304 = pneg %p104
      %p305 = pneg %p101
      %p306 = pneg %p125
      %p307 = pneg %p122
      %p308 = pneg %p146
      %p309 = pneg %p143
      %p310 = pneg %p167
      %p311 = pneg %p164
      %p312 = pneg %p188
      %p313 = pneg %p185
      %p314 = pneg %p209
      %p315 = pneg %p206
      %p316 = pneg %p235
      %p317 = pneg %p232
      %p318 = scmp.lt.s32.totalorder %s20, 1
      %s319 = scalar_select %p318, %s20, 1
      %s320 = smul.addr %s319, 8
      %s321 = scalar_lea.vmem %s9, %s320
      %p322 = scmp.lt.s32.totalorder %s20, 1
      %s323 = scalar_select %p322, %s20, 1
      %s324 = smul.addr %s323, 22
      %s325 = smul.addr %s324, 8
      %s326 = scalar_lea.vmem %s0, %s325
      %p327 = scmp.lt.s32.totalorder %s20, 1
      %s328 = scalar_select %p327, %s20, 1
      %s329 = smul.addr %s328, 8
      %s330 = scalar_lea.vmem %s9, %s329
      %p331 = scmp.eq.s32.totalorder %s20, 0
      // Predicated region
      $region57: #{random_basic_block20_forward.1} parent=55 // pred_check
        %p332 = pneg %p331
      $region58: #{random_basic_block20_forward.1} parent=55 // pred_check_branch
        %334 = sbr.rel (%p332) target = $region60
      $region59: #{random_basic_block20_forward.1} parent=55 // pred_region
        %vm335 = vcmask 64512
        %336 = vst.msk [vmem:[#allocation3] sm:$0xff] %vm335, 0.0
        %vm337 = vcmask 58368
        %338 = vst.msk [vmem:[#allocation3 + $0x8] sm:$0x3] %vm337, 0.0
        %339 = vst.msk [vmem:[#allocation3 + $0x10] sm:$0xff] %vm335, 0.0
        %340 = vst.msk [vmem:[#allocation3 + $0x18] sm:$0x3] %vm337, 0.0
        %341 = vst.msk [vmem:[#allocation3 + $0x20] sm:$0xff] %vm335, 0.0
        %342 = vst.msk [vmem:[#allocation3 + $0x28] sm:$0x3] %vm337, 0.0
        %343 = vst.msk [vmem:[#allocation3 + $0x30] sm:$0xff] %vm335, 0.0
        %344 = vst.msk [vmem:[#allocation3 + $0x38] sm:$0x3] %vm337, 0.0
        %345 = vst.msk [vmem:[#allocation3 + $0x40] sm:$0xff] %vm335, 0.0
        %346 = vst.msk [vmem:[#allocation3 + $0x48] sm:$0x3] %vm337, 0.0
        %347 = vst.msk [vmem:[#allocation3 + $0x50] sm:$0xff] %vm335, 0.0
        %348 = vst.msk [vmem:[#allocation3 + $0x58] sm:$0x3] %vm337, 0.0
        %349 = vst.msk [vmem:[#allocation3 + $0x60] sm:$0xff] %vm335, 0.0
        %350 = vst.msk [vmem:[#allocation3 + $0x68] sm:$0x3] %vm337, 0.0
        %351 = vst.msk [vmem:[#allocation3 + $0x70] sm:$0xff] %vm335, 0.0
        %352 = vst.msk [vmem:[#allocation3 + $0x78] sm:$0x3] %vm337, 0.0
        %353 = vst.msk [vmem:[#allocation3 + $0x80] sm:$0xff] %vm335, 0.0
        %354 = vst.msk [vmem:[#allocation3 + $0x88] sm:$0x3] %vm337, 0.0
        %355 = vst.msk [vmem:[#allocation3 + $0x90] sm:$0xff] %vm335, 0.0
        %356 = vst.msk [vmem:[#allocation3 + $0x98] sm:$0x3] %vm337, 0.0
      $region60: #{random_basic_block20_forward.1} parent=55 // pred_fallthru
        _
      %v357 = vld [vmem:[%s326] sm:$0xff]
      %v358 = vld [vmem:[%s326 + $0x8] sm:$0x7]
      %v359 = vld [vmem:[%s326 + $0x10] sm:$0xff]
      %v360 = vld [vmem:[%s326 + $0x18] sm:$0x7]
      %v361 = vld [vmem:[%s326 + $0x20] sm:$0xff]
      %v362 = vld [vmem:[%s326 + $0x28] sm:$0x7]
      %v363 = vld [vmem:[%s326 + $0x30] sm:$0xff]
      %v364 = vld [vmem:[%s326 + $0x38] sm:$0x7]
      %v365 = vld [vmem:[%s326 + $0x40] sm:$0xff]
      %v366 = vld [vmem:[%s326 + $0x48] sm:$0x7]
      %v367 = vld [vmem:[%s326 + $0x50] sm:$0xff]
      %v368 = vld [vmem:[%s326 + $0x58] sm:$0x7]
      %v369 = vld [vmem:[%s326 + $0x60] sm:$0xff]
      %v370 = vld [vmem:[%s326 + $0x68] sm:$0x7]
      %v371 = vld [vmem:[%s326 + $0x70] sm:$0xff]
      %v372 = vld [vmem:[%s326 + $0x78] sm:$0x7]
      %v373 = vld [vmem:[%s326 + $0x80] sm:$0xff]
      %v374 = vld [vmem:[%s326 + $0x88] sm:$0x7]
      %v375 = vld [vmem:[%s326 + $0x90] sm:$0xff]
      %v376 = vld [vmem:[%s326 + $0x98] sm:$0x7]
      %v377 = vld [vmem:[%s326 + $0xa0] sm:$0xff]
      %v378 = vld [vmem:[%s326 + $0xa8] sm:$0x7]
      %v379 = vld [vmem:[%s2] sm:$0x1]
      %v380 = vld [vmem:[%s3] sm:$0x1]
      %v382 = vlaneseq
      %v383 = vshrl.u32 %v382, 7
      %v384 = vsub.s32 0, %v383
      %v385 = vrot.slane %v379, %v384
      %v387 = vmul.f32 %v357, %v385
      %v388 = vmul.f32 %v358, %v385
      %v389 = vmul.f32 %v359, %v385
      %v390 = vmul.f32 %v360, %v385
      %v391 = vmul.f32 %v361, %v385
      %v392 = vmul.f32 %v362, %v385
      %v393 = vmul.f32 %v363, %v385
      %v394 = vmul.f32 %v364, %v385
      %v395 = vmul.f32 %v365, %v385
      %v396 = vmul.f32 %v366, %v385
      %v397 = vmul.f32 %v367, %v385
      %v398 = vmul.f32 %v368, %v385
      %v399 = vmul.f32 %v369, %v385
      %v400 = vmul.f32 %v370, %v385
      %v401 = vmul.f32 %v371, %v385
      %v402 = vmul.f32 %v372, %v385
      %v403 = vmul.f32 %v373, %v385
      %v404 = vmul.f32 %v374, %v385
      %v405 = vmul.f32 %v375, %v385
      %v406 = vmul.f32 %v376, %v385
      %v407 = vmul.f32 %v377, %v385
      %v408 = vmul.f32 %v378, %v385
      %v410 = vlaneseq
      %v411 = vshrl.u32 %v410, 7
      %v412 = vsub.s32 0, %v411
      %v413 = vrot.slane %v380, %v412
      %v415 = vadd.f32 %v387, %v413
      %v416 = vadd.f32 %v388, %v413
      %v417 = vadd.f32 %v389, %v413
      %v418 = vadd.f32 %v390, %v413
      %v419 = vadd.f32 %v391, %v413
      %v420 = vadd.f32 %v392, %v413
      %v421 = vadd.f32 %v393, %v413
      %v422 = vadd.f32 %v394, %v413
      %v423 = vadd.f32 %v395, %v413
      %v424 = vadd.f32 %v396, %v413
      %v425 = vadd.f32 %v397, %v413
      %v426 = vadd.f32 %v398, %v413
      %v427 = vadd.f32 %v399, %v413
      %v428 = vadd.f32 %v400, %v413
      %v429 = vadd.f32 %v401, %v413
      %v430 = vadd.f32 %v402, %v413
      %v431 = vadd.f32 %v403, %v413
      %v432 = vadd.f32 %v404, %v413
      %v433 = vadd.f32 %v405, %v413
      %v434 = vadd.f32 %v406, %v413
      %v435 = vadd.f32 %v407, %v413
      %v436 = vadd.f32 %v408, %v413
      %v437 = vmax.f32 %v415, 0.0
      %v438 = vmax.f32 %v416, 0.0
      %v439 = vmax.f32 %v417, 0.0
      %v440 = vmax.f32 %v418, 0.0
      %v441 = vmax.f32 %v419, 0.0
      %v442 = vmax.f32 %v420, 0.0
      %v443 = vmax.f32 %v421, 0.0
      %v444 = vmax.f32 %v422, 0.0
      %v445 = vmax.f32 %v423, 0.0
      %v446 = vmax.f32 %v424, 0.0
      %v447 = vmax.f32 %v425, 0.0
      %v448 = vmax.f32 %v426, 0.0
      %v449 = vmax.f32 %v427, 0.0
      %v450 = vmax.f32 %v428, 0.0
      %v451 = vmax.f32 %v429, 0.0
      %v452 = vmax.f32 %v430, 0.0
      %v453 = vmax.f32 %v431, 0.0
      %v454 = vmax.f32 %v432, 0.0
      %v455 = vmax.f32 %v433, 0.0
      %v456 = vmax.f32 %v434, 0.0
      %v457 = vmax.f32 %v435, 0.0
      %v458 = vmax.f32 %v436, 0.0
      %v459 = vld [vmem:[%s1] sm:$0xff]
      %v460 = vld [vmem:[%s1 + $0x8] sm:$0x7]
      %v461 = vld [vmem:[%s1 + $0x10] sm:$0xff]
      %v462 = vld [vmem:[%s1 + $0x18] sm:$0x7]
      %v463 = vld [vmem:[%s1 + $0x20] sm:$0xff]
      %v464 = vld [vmem:[%s1 + $0x28] sm:$0x7]
      %v465 = vld [vmem:[%s1 + $0x30] sm:$0xff]
      %v466 = vld [vmem:[%s1 + $0x38] sm:$0x7]
      %v467 = vld [vmem:[%s1 + $0x40] sm:$0xff]
      %v468 = vld [vmem:[%s1 + $0x48] sm:$0x7]
      %v469 = vld [vmem:[%s1 + $0x50] sm:$0xff]
      %v470 = vld [vmem:[%s1 + $0x58] sm:$0x7]
      %v471 = vld [vmem:[%s1 + $0x60] sm:$0xff]
      %v472 = vld [vmem:[%s1 + $0x68] sm:$0x7]
      %v473 = vld [vmem:[%s1 + $0x70] sm:$0xff]
      %v474 = vld [vmem:[%s1 + $0x78] sm:$0x7]
      %v475 = vld [vmem:[%s1 + $0x80] sm:$0xff]
      %v476 = vld [vmem:[%s1 + $0x88] sm:$0x7]
      %v477 = vld [vmem:[%s1 + $0x90] sm:$0xff]
      %v478 = vld [vmem:[%s1 + $0x98] sm:$0x7]
      %v479 = vld [vmem:[%s1 + $0xa0] sm:$0xff]
      %v480 = vld [vmem:[%s1 + $0xa8] sm:$0x7]
      %v481 = vmul.f32 %v437, %v459
      %v482 = vmul.f32 %v438, %v460
      %v483 = vmul.f32 %v439, %v461
      %v484 = vmul.f32 %v440, %v462
      %v485 = vmul.f32 %v441, %v463
      %v486 = vmul.f32 %v442, %v464
      %v487 = vmul.f32 %v443, %v465
      %v488 = vmul.f32 %v444, %v466
      %v489 = vmul.f32 %v445, %v467
      %v490 = vmul.f32 %v446, %v468
      %v491 = vmul.f32 %v447, %v469
      %v492 = vmul.f32 %v448, %v470
      %v493 = vmul.f32 %v449, %v471
      %v494 = vmul.f32 %v450, %v472
      %v495 = vmul.f32 %v451, %v473
      %v496 = vmul.f32 %v452, %v474
      %v497 = vmul.f32 %v453, %v475
      %v498 = vmul.f32 %v454, %v476
      %v499 = vmul.f32 %v455, %v477
      %v500 = vmul.f32 %v456, %v478
      %v501 = vmul.f32 %v457, %v479
      %v502 = vmul.f32 %v458, %v480
      %vm503 = vcmask 130048
      %504 = vst.msk [vmem:[#allocation2] sm:$0xff] %vm503, %v481
      %vm505 = vcmask 124928
      %506 = vst.msk [vmem:[#allocation2 + $0x8] sm:$0x7] %vm505, %v482
      %507 = vst.msk [vmem:[#allocation2 + $0x10] sm:$0xff] %vm503, %v483
      %508 = vst.msk [vmem:[#allocation2 + $0x18] sm:$0x7] %vm505, %v484
      %509 = vst.msk [vmem:[#allocation2 + $0x20] sm:$0xff] %vm503, %v485
      %510 = vst.msk [vmem:[#allocation2 + $0x28] sm:$0x7] %vm505, %v486
      %511 = vst.msk [vmem:[#allocation2 + $0x30] sm:$0xff] %vm503, %v487
      %512 = vst.msk [vmem:[#allocation2 + $0x38] sm:$0x7] %vm505, %v488
      %513 = vst.msk [vmem:[#allocation2 + $0x40] sm:$0xff] %vm503, %v489
      %514 = vst.msk [vmem:[#allocation2 + $0x48] sm:$0x7] %vm505, %v490
      %515 = vst.msk [vmem:[#allocation2 + $0x50] sm:$0xff] %vm503, %v491
      %516 = vst.msk [vmem:[#allocation2 + $0x58] sm:$0x7] %vm505, %v492
      %517 = vst.msk [vmem:[#allocation2 + $0x60] sm:$0xff] %vm503, %v493
      %518 = vst.msk [vmem:[#allocation2 + $0x68] sm:$0x7] %vm505, %v494
      %519 = vst.msk [vmem:[#allocation2 + $0x70] sm:$0xff] %vm503, %v495
      %520 = vst.msk [vmem:[#allocation2 + $0x78] sm:$0x7] %vm505, %v496
      %521 = vst.msk [vmem:[#allocation2 + $0x80] sm:$0xff] %vm503, %v497
      %522 = vst.msk [vmem:[#allocation2 + $0x88] sm:$0x7] %vm505, %v498
      %523 = vst.msk [vmem:[#allocation2 + $0x90] sm:$0xff] %vm503, %v499
      %524 = vst.msk [vmem:[#allocation2 + $0x98] sm:$0x7] %vm505, %v500
      %525 = vst.msk [vmem:[#allocation2 + $0xa0] sm:$0xff] %vm503, %v501
      %526 = vst.msk [vmem:[#allocation2 + $0xa8] sm:$0x7] %vm505, %v502
      %v527 = vld [vmem:[#allocation2] sm:$0xff]
      %v528 = vld [vmem:[#allocation2 + $0x10] sm:$0xff]
      %v529 = vld [vmem:[#allocation2 + $0x20] sm:$0xff]
      %v530 = vld [vmem:[#allocation2 + $0x30] sm:$0xff]
      %v531 = vld [vmem:[#allocation2 + $0x40] sm:$0xff]
      %v532 = vld [vmem:[#allocation2 + $0x50] sm:$0xff]
      %v533 = vld [vmem:[#allocation2 + $0x60] sm:$0xff]
      %v534 = vld [vmem:[#allocation2 + $0x70] sm:$0xff]
      %v535 = vld [vmem:[#allocation2 + $0x1] sm:$0xff]
      %v536 = vld [vmem:[#allocation2 + $0x11] sm:$0xff]
      %v537 = vld [vmem:[#allocation2 + $0x21] sm:$0xff]
      %v538 = vld [vmem:[#allocation2 + $0x31] sm:$0xff]
      %v539 = vld [vmem:[#allocation2 + $0x41] sm:$0xff]
      %v540 = vld [vmem:[#allocation2 + $0x51] sm:$0xff]
      %v541 = vld [vmem:[#allocation2 + $0x61] sm:$0xff]
      %v542 = vld [vmem:[#allocation2 + $0x71] sm:$0xff]
      %v543 = vld [vmem:[#allocation2 + $0x2] sm:$0xff]
      %v544 = vld [vmem:[#allocation2 + $0x12] sm:$0xff]
      %v545 = vld [vmem:[#allocation2 + $0x22] sm:$0xff]
      %v546 = vld [vmem:[#allocation2 + $0x32] sm:$0xff]
      %v547 = vld [vmem:[#allocation2 + $0x42] sm:$0xff]
      %v548 = vld [vmem:[#allocation2 + $0x52] sm:$0xff]
      %v549 = vld [vmem:[#allocation2 + $0x62] sm:$0xff]
      %v550 = vld [vmem:[#allocation2 + $0x72] sm:$0xff]
      %v551 = vld [vmem:[#allocation2 + $0x3] sm:$0xff]
      %v552 = vld [vmem:[#allocation2 + $0x13] sm:$0xff]
      %v553 = vld [vmem:[#allocation2 + $0x23] sm:$0xff]
      %v554 = vld [vmem:[#allocation2 + $0x33] sm:$0xff]
      %v555 = vld [vmem:[#allocation2 + $0x43] sm:$0xff]
      %v556 = vld [vmem:[#allocation2 + $0x53] sm:$0xff]
      %v557 = vld [vmem:[#allocation2 + $0x63] sm:$0xff]
      %v558 = vld [vmem:[#allocation2 + $0x73] sm:$0xff]
      %567 = vrot.lane.b32.xlu0 %v535, 16
      %v568 = vpop.permute.xlu0 %567
      %569 = vrot.lane.b32.xlu0 %v536, 16
      %v570 = vpop.permute.xlu0 %569
      %571 = vrot.lane.b32.xlu0 %v537, 16
      %v572 = vpop.permute.xlu0 %571
      %573 = vrot.lane.b32.xlu0 %v538, 16
      %v574 = vpop.permute.xlu0 %573
      %575 = vrot.lane.b32.xlu0 %v539, 16
      %v576 = vpop.permute.xlu0 %575
      %577 = vrot.lane.b32.xlu0 %v540, 16
      %v578 = vpop.permute.xlu0 %577
      %579 = vrot.lane.b32.xlu0 %v541, 16
      %v580 = vpop.permute.xlu0 %579
      %581 = vrot.lane.b32.xlu0 %v542, 16
      %v582 = vpop.permute.xlu0 %581
      %599 = vrot.lane.b32.xlu0 %v543, 32
      %v600 = vpop.permute.xlu0 %599
      %601 = vrot.lane.b32.xlu0 %v544, 32
      %v602 = vpop.permute.xlu0 %601
      %603 = vrot.lane.b32.xlu0 %v545, 32
      %v604 = vpop.permute.xlu0 %603
      %605 = vrot.lane.b32.xlu0 %v546, 32
      %v606 = vpop.permute.xlu0 %605
      %607 = vrot.lane.b32.xlu0 %v547, 32
      %v608 = vpop.permute.xlu0 %607
      %609 = vrot.lane.b32.xlu0 %v548, 32
      %v610 = vpop.permute.xlu0 %609
      %611 = vrot.lane.b32.xlu0 %v549, 32
      %v612 = vpop.permute.xlu0 %611
      %613 = vrot.lane.b32.xlu0 %v550, 32
      %v614 = vpop.permute.xlu0 %613
      %631 = vrot.lane.b32.xlu0 %v551, 48
      %v632 = vpop.permute.xlu0 %631
      %633 = vrot.lane.b32.xlu0 %v552, 48
      %v634 = vpop.permute.xlu0 %633
      %635 = vrot.lane.b32.xlu0 %v553, 48
      %v636 = vpop.permute.xlu0 %635
      %637 = vrot.lane.b32.xlu0 %v554, 48
      %v638 = vpop.permute.xlu0 %637
      %639 = vrot.lane.b32.xlu0 %v555, 48
      %v640 = vpop.permute.xlu0 %639
      %641 = vrot.lane.b32.xlu0 %v556, 48
      %v642 = vpop.permute.xlu0 %641
      %643 = vrot.lane.b32.xlu0 %v557, 48
      %v644 = vpop.permute.xlu0 %643
      %645 = vrot.lane.b32.xlu0 %v558, 48
      %v646 = vpop.permute.xlu0 %645
      %v655 = vsel %vm503, %v527, %v568
      %v656 = vsel %vm503, %v528, %v570
      %v657 = vsel %vm503, %v529, %v572
      %v658 = vsel %vm503, %v530, %v574
      %v659 = vsel %vm503, %v531, %v576
      %v660 = vsel %vm503, %v532, %v578
      %v661 = vsel %vm503, %v533, %v580
      %v662 = vsel %vm503, %v534, %v582
      %vm663 = vcmask 261120
      %v664 = vsel %vm663, %v655, %v600
      %v665 = vsel %vm663, %v656, %v602
      %v666 = vsel %vm663, %v657, %v604
      %v667 = vsel %vm663, %v658, %v606
      %v668 = vsel %vm663, %v659, %v608
      %v669 = vsel %vm663, %v660, %v610
      %v670 = vsel %vm663, %v661, %v612
      %v671 = vsel %vm663, %v662, %v614
      %vm672 = vcmask 392192
      %v673 = vsel %vm672, %v664, %v632
      %v674 = vsel %vm672, %v665, %v634
      %v675 = vsel %vm672, %v666, %v636
      %v676 = vsel %vm672, %v667, %v638
      %v677 = vsel %vm672, %v668, %v640
      %v678 = vsel %vm672, %v669, %v642
      %v679 = vsel %vm672, %v670, %v644
      %v680 = vsel %vm672, %v671, %v646
      %v681 = vld [vmem:[%s4] sm:$0xff]
      %v682 = vld [vmem:[%s4 + $0x8] sm:$0xff]
      %v683 = vld [vmem:[%s4 + $0x10] sm:$0xff]
      %v684 = vld [vmem:[%s4 + $0x18] sm:$0xff]
      %v685 = vld [vmem:[%s4 + $0x20] sm:$0xff]
      %v686 = vld [vmem:[%s4 + $0x28] sm:$0xff]
      %v687 = vld [vmem:[%s4 + $0x30] sm:$0xff]
      %v688 = vld [vmem:[%s4 + $0x38] sm:$0xff]
      %s689 = scalar_lea.vmem [#allocation2], 16
      %v690 = vld [vmem:[%s689] sm:$0xff]
      %v691 = vld [vmem:[%s689 + $0x10] sm:$0xff]
      %v692 = vld [vmem:[%s689 + $0x20] sm:$0xff]
      %v693 = vld [vmem:[%s689 + $0x30] sm:$0xff]
      %v694 = vld [vmem:[%s689 + $0x40] sm:$0xff]
      %v695 = vld [vmem:[%s689 + $0x50] sm:$0xff]
      %v696 = vld [vmem:[%s689 + $0x60] sm:$0xff]
      %v697 = vld [vmem:[%s689 + $0x70] sm:$0xff]
      %v698 = vld [vmem:[%s689 + $0x1] sm:$0xff]
      %v699 = vld [vmem:[%s689 + $0x11] sm:$0xff]
      %v700 = vld [vmem:[%s689 + $0x21] sm:$0xff]
      %v701 = vld [vmem:[%s689 + $0x31] sm:$0xff]
      %v702 = vld [vmem:[%s689 + $0x41] sm:$0xff]
      %v703 = vld [vmem:[%s689 + $0x51] sm:$0xff]
      %v704 = vld [vmem:[%s689 + $0x61] sm:$0xff]
      %v705 = vld [vmem:[%s689 + $0x71] sm:$0xff]
      %v706 = vld [vmem:[%s689 + $0x2] sm:$0xff]
      %v707 = vld [vmem:[%s689 + $0x12] sm:$0xff]
      %v708 = vld [vmem:[%s689 + $0x22] sm:$0xff]
      %v709 = vld [vmem:[%s689 + $0x32] sm:$0xff]
      %v710 = vld [vmem:[%s689 + $0x42] sm:$0xff]
      %v711 = vld [vmem:[%s689 + $0x52] sm:$0xff]
      %v712 = vld [vmem:[%s689 + $0x62] sm:$0xff]
      %v713 = vld [vmem:[%s689 + $0x72] sm:$0xff]
      %v714 = vld [vmem:[%s689 + $0x3] sm:$0xff]
      %v715 = vld [vmem:[%s689 + $0x13] sm:$0xff]
      %v716 = vld [vmem:[%s689 + $0x23] sm:$0xff]
      %v717 = vld [vmem:[%s689 + $0x33] sm:$0xff]
      %v718 = vld [vmem:[%s689 + $0x43] sm:$0xff]
      %v719 = vld [vmem:[%s689 + $0x53] sm:$0xff]
      %v720 = vld [vmem:[%s689 + $0x63] sm:$0xff]
      %v721 = vld [vmem:[%s689 + $0x73] sm:$0xff]
      %730 = vrot.lane.b32.xlu0 %v698, 16
      %v731 = vpop.permute.xlu0 %730
      %732 = vrot.lane.b32.xlu0 %v699, 16
      %v733 = vpop.permute.xlu0 %732
      %734 = vrot.lane.b32.xlu0 %v700, 16
      %v735 = vpop.permute.xlu0 %734
      %736 = vrot.lane.b32.xlu0 %v701, 16
      %v737 = vpop.permute.xlu0 %736
      %738 = vrot.lane.b32.xlu0 %v702, 16
      %v739 = vpop.permute.xlu0 %738
      %740 = vrot.lane.b32.xlu0 %v703, 16
      %v741 = vpop.permute.xlu0 %740
      %742 = vrot.lane.b32.xlu0 %v704, 16
      %v743 = vpop.permute.xlu0 %742
      %744 = vrot.lane.b32.xlu0 %v705, 16
      %v745 = vpop.permute.xlu0 %744
      %762 = vrot.lane.b32.xlu0 %v706, 32
      %v763 = vpop.permute.xlu0 %762
      %764 = vrot.lane.b32.xlu0 %v707, 32
      %v765 = vpop.permute.xlu0 %764
      %766 = vrot.lane.b32.xlu0 %v708, 32
      %v767 = vpop.permute.xlu0 %766
      %768 = vrot.lane.b32.xlu0 %v709, 32
      %v769 = vpop.permute.xlu0 %768
      %770 = vrot.lane.b32.xlu0 %v710, 32
      %v771 = vpop.permute.xlu0 %770
      %772 = vrot.lane.b32.xlu0 %v711, 32
      %v773 = vpop.permute.xlu0 %772
      %774 = vrot.lane.b32.xlu0 %v712, 32
      %v775 = vpop.permute.xlu0 %774
      %776 = vrot.lane.b32.xlu0 %v713, 32
      %v777 = vpop.permute.xlu0 %776
      %794 = vrot.lane.b32.xlu0 %v714, 48
      %v795 = vpop.permute.xlu0 %794
      %796 = vrot.lane.b32.xlu0 %v715, 48
      %v797 = vpop.permute.xlu0 %796
      %798 = vrot.lane.b32.xlu0 %v716, 48
      %v799 = vpop.permute.xlu0 %798
      %800 = vrot.lane.b32.xlu0 %v717, 48
      %v801 = vpop.permute.xlu0 %800
      %802 = vrot.lane.b32.xlu0 %v718, 48
      %v803 = vpop.permute.xlu0 %802
      %804 = vrot.lane.b32.xlu0 %v719, 48
      %v805 = vpop.permute.xlu0 %804
      %806 = vrot.lane.b32.xlu0 %v720, 48
      %v807 = vpop.permute.xlu0 %806
      %808 = vrot.lane.b32.xlu0 %v721, 48
      %v809 = vpop.permute.xlu0 %808
      %v818 = vsel %vm503, %v690, %v731
      %v819 = vsel %vm503, %v691, %v733
      %v820 = vsel %vm503, %v692, %v735
      %v821 = vsel %vm503, %v693, %v737
      %v822 = vsel %vm503, %v694, %v739
      %v823 = vsel %vm503, %v695, %v741
      %v824 = vsel %vm503, %v696, %v743
      %v825 = vsel %vm503, %v697, %v745
      %v826 = vsel %vm663, %v818, %v763
      %v827 = vsel %vm663, %v819, %v765
      %v828 = vsel %vm663, %v820, %v767
      %v829 = vsel %vm663, %v821, %v769
      %v830 = vsel %vm663, %v822, %v771
      %v831 = vsel %vm663, %v823, %v773
      %v832 = vsel %vm663, %v824, %v775
      %v833 = vsel %vm663, %v825, %v777
      %v834 = vsel %vm672, %v826, %v795
      %v835 = vsel %vm672, %v827, %v797
      %v836 = vsel %vm672, %v828, %v799
      %v837 = vsel %vm672, %v829, %v801
      %v838 = vsel %vm672, %v830, %v803
      %v839 = vsel %vm672, %v831, %v805
      %v840 = vsel %vm672, %v832, %v807
      %v841 = vsel %vm672, %v833, %v809
      %s842 = scalar_lea.vmem %s4, 64
      %v843 = vld [vmem:[%s842] sm:$0xff]
      %v844 = vld [vmem:[%s842 + $0x8] sm:$0xff]
      %v845 = vld [vmem:[%s842 + $0x10] sm:$0xff]
      %v846 = vld [vmem:[%s842 + $0x18] sm:$0xff]
      %v847 = vld [vmem:[%s842 + $0x20] sm:$0xff]
      %v848 = vld [vmem:[%s842 + $0x28] sm:$0xff]
      %v849 = vld [vmem:[%s842 + $0x30] sm:$0xff]
      %v850 = vld [vmem:[%s842 + $0x38] sm:$0xff]
      %vm851 = vcmask 523264
      %v853 = vsel %vm851, %v834, 0
      %v856 = vsel %vm851, %v835, 0
      %v859 = vsel %vm851, %v836, 0
      %v862 = vsel %vm851, %v837, 0
      %v865 = vsel %vm851, %v838, 0
      %v868 = vsel %vm851, %v839, 0
      %v871 = vsel %vm851, %v840, 0
      %v874 = vsel %vm851, %v841, 0
      %876 = vmatprep.subr.mxu0 0.0
      %877 = vmatpush1.msra.mxu0 %v843
      %878 = vmatprep.subr.mxu0 0.0
      %879 = vmatpush1.msra.mxu0 %v844
      %880 = vmatprep.subr.mxu0 0.0
      %881 = vmatpush1.msra.mxu0 %v845
      %882 = vmatprep.subr.mxu0 0.0
      %883 = vmatpush1.msra.mxu0 %v846
      %884 = vmatprep.subr.mxu0 0.0
      %885 = vmatpush1.msra.mxu0 %v847
      %886 = vmatprep.subr.mxu0 0.0
      %887 = vmatpush1.msra.mxu0 %v848
      %888 = vmatprep.subr.mxu0 0.0
      %889 = vmatpush1.msra.mxu0 %v849
      %890 = vmatprep.subr.mxu0 0.0
      %891 = vmatpush1.msra.mxu0 %v850
      %892 = vmatprep.subr.mxu0 0.0
      %893 = vmatpush1.msra.mxu0 0.0
      %894 = vmatprep.subr.mxu0 0.0
      %895 = vmatpush1.msra.mxu0 0.0
      %896 = vmatprep.subr.mxu0 0.0
      %897 = vmatpush1.msra.mxu0 0.0
      %898 = vmatprep.subr.mxu0 0.0
      %899 = vmatpush1.msra.mxu0 0.0
      %900 = vmatprep.subr.mxu0 0.0
      %901 = vmatpush1.msra.mxu0 0.0
      %902 = vmatprep.subr.mxu0 0.0
      %903 = vmatpush1.msra.mxu0 0.0
      %904 = vmatprep.subr.mxu0 0.0
      %905 = vmatpush1.msra.mxu0 0.0
      %906 = vmatprep.subr.mxu0 0.0
      %907 = vmatpush1.msra.mxu0 0.0
      %908 = vmatprep.subr.mxu0 0.0
      %909 = vmatpush1.msra.mxu0 0.0
      %910 = vmatprep.subr.mxu0 0.0
      %911 = vmatpush1.msra.mxu0 0.0
      %912 = vmatprep.subr.mxu0 0.0
      %913 = vmatpush1.msra.mxu0 0.0
      %914 = vmatprep.subr.mxu0 0.0
      %915 = vmatpush1.msra.mxu0 0.0
      %916 = vmatprep.subr.mxu0 0.0
      %917 = vmatpush1.msra.mxu0 0.0
      %918 = vmatprep.subr.mxu0 0.0
      %919 = vmatpush1.msra.mxu0 0.0
      %920 = vmatprep.subr.mxu0 0.0
      %921 = vmatpush1.msra.mxu0 0.0
      %922 = vmatprep.subr.mxu0 0.0
      %923 = vmatpush1.msra.mxu0 0.0
      %924 = vmatprep.subr.mxu0 0.0
      %925 = vmatpush1.msra.mxu0 0.0
      %926 = vmatprep.subr.mxu0 0.0
      %927 = vmatpush1.msra.mxu0 0.0
      %928 = vmatprep.subr.mxu0 0.0
      %929 = vmatpush1.msra.mxu0 0.0
      %930 = vmatprep.subr.mxu0 0.0
      %931 = vmatpush1.msra.mxu0 0.0
      %932 = vmatprep.subr.mxu0 0.0
      %933 = vmatpush1.msra.mxu0 0.0
      %934 = vmatprep.subr.mxu0 0.0
      %935 = vmatpush1.msra.mxu0 0.0
      %936 = vmatprep.subr.mxu0 0.0
      %937 = vmatpush1.msra.mxu0 0.0
      %938 = vmatprep.subr.mxu0 0.0
      %939 = vmatpush1.msra.mxu0 0.0
      %940 = vmatprep.mubr.f32.mxu0 0.0
      %941 = vmatmul.mubr.f32.gmra.mrb[0].mxu0 %v853
      %v942 = vpop.f32.mrb[0].mxu0
      %v943 = vadd.f32 0.0, %v942
      %v944 = vpop.f32.mrb[0].mxu0
      %945 = vmatprep.mubr.f32.mxu0 0.0
      %946 = vmatmul.mubr.f32.gmra.mrb[0].mxu0 %v856
      %v947 = vpop.f32.mrb[0].mxu0
      %v948 = vadd.f32 0.0, %v947
      %v949 = vpop.f32.mrb[0].mxu0
      %950 = vmatprep.mubr.f32.mxu0 0.0
      %951 = vmatmul.mubr.f32.gmra.mrb[0].mxu0 %v859
      %v952 = vpop.f32.mrb[0].mxu0
      %v953 = vadd.f32 0.0, %v952
      %v954 = vpop.f32.mrb[0].mxu0
      %955 = vmatprep.mubr.f32.mxu0 0.0
      %956 = vmatmul.mubr.f32.gmra.mrb[0].mxu0 %v862
      %v957 = vpop.f32.mrb[0].mxu0
      %v958 = vadd.f32 0.0, %v957
      %v959 = vpop.f32.mrb[0].mxu0
      %960 = vmatprep.mubr.f32.mxu0 0.0
      %961 = vmatmul.mubr.f32.gmra.mrb[0].mxu0 %v865
      %v962 = vpop.f32.mrb[0].mxu0
      %v963 = vadd.f32 0.0, %v962
      %v964 = vpop.f32.mrb[0].mxu0
      %965 = vmatprep.mubr.f32.mxu0 0.0
      %966 = vmatmul.mubr.f32.gmra.mrb[0].mxu0 %v868
      %v967 = vpop.f32.mrb[0].mxu0
      %v968 = vadd.f32 0.0, %v967
      %v969 = vpop.f32.mrb[0].mxu0
      %970 = vmatprep.mubr.f32.mxu0 0.0
      %971 = vmatmul.mubr.f32.gmra.mrb[0].mxu0 %v871
      %v972 = vpop.f32.mrb[0].mxu0
      %v973 = vadd.f32 0.0, %v972
      %v974 = vpop.f32.mrb[0].mxu0
      %975 = vmatprep.mubr.f32.mxu0 0.0
      %976 = vmatmul.mubr.f32.gmra.mrb[0].mxu0 %v874
      %v977 = vpop.f32.mrb[0].mxu0
      %v978 = vadd.f32 0.0, %v977
      %v979 = vpop.f32.mrb[0].mxu0
      %980 = vdwg.mxu0
      %v982 = vsel %vm851, %v673, 0
      %v985 = vsel %vm851, %v674, 0
      %v988 = vsel %vm851, %v675, 0
      %v991 = vsel %vm851, %v676, 0
      %v994 = vsel %vm851, %v677, 0
      %v997 = vsel %vm851, %v678, 0
      %v1000 = vsel %vm851, %v679, 0
      %v1003 = vsel %vm851, %v680, 0
      %1005 = vmatprep.subr.mxu0 0.0
      %1006 = vmatpush1.msra.mxu0 %v681
      %1007 = vmatprep.subr.mxu0 0.0
      %1008 = vmatpush1.msra.mxu0 %v682
      %1009 = vmatprep.subr.mxu0 0.0
      %1010 = vmatpush1.msra.mxu0 %v683
      %1011 = vmatprep.subr.mxu0 0.0
      %1012 = vmatpush1.msra.mxu0 %v684
      %1013 = vmatprep.subr.mxu0 0.0
      %1014 = vmatpush1.msra.mxu0 %v685
      %1015 = vmatprep.subr.mxu0 0.0
      %1016 = vmatpush1.msra.mxu0 %v686
      %1017 = vmatprep.subr.mxu0 0.0
      %1018 = vmatpush1.msra.mxu0 %v687
      %1019 = vmatprep.subr.mxu0 0.0
      %1020 = vmatpush1.msra.mxu0 %v688
      %1021 = vmatprep.subr.mxu0 0.0
      %1022 = vmatpush1.msra.mxu0 0.0
      %1023 = vmatprep.subr.mxu0 0.0
      %1024 = vmatpush1.msra.mxu0 0.0
      %1025 = vmatprep.subr.mxu0 0.0
      %1026 = vmatpush1.msra.mxu0 0.0
      %1027 = vmatprep.subr.mxu0 0.0
      %1028 = vmatpush1.msra.mxu0 0.0
      %1029 = vmatprep.subr.mxu0 0.0
      %1030 = vmatpush1.msra.mxu0 0.0
      %1031 = vmatprep.subr.mxu0 0.0
      %1032 = vmatpush1.msra.mxu0 0.0
      %1033 = vmatprep.subr.mxu0 0.0
      %1034 = vmatpush1.msra.mxu0 0.0
      %1035 = vmatprep.subr.mxu0 0.0
      %1036 = vmatpush1.msra.mxu0 0.0
      %1037 = vmatprep.subr.mxu0 0.0
      %1038 = vmatpush1.msra.mxu0 0.0
      %1039 = vmatprep.subr.mxu0 0.0
      %1040 = vmatpush1.msra.mxu0 0.0
      %1041 = vmatprep.subr.mxu0 0.0
      %1042 = vmatpush1.msra.mxu0 0.0
      %1043 = vmatprep.subr.mxu0 0.0
      %1044 = vmatpush1.msra.mxu0 0.0
      %1045 = vmatprep.subr.mxu0 0.0
      %1046 = vmatpush1.msra.mxu0 0.0
      %1047 = vmatprep.subr.mxu0 0.0
      %1048 = vmatpush1.msra.mxu0 0.0
      %1049 = vmatprep.subr.mxu0 0.0
      %1050 = vmatpush1.msra.mxu0 0.0
      %1051 = vmatprep.subr.mxu0 0.0
      %1052 = vmatpush1.msra.mxu0 0.0
      %1053 = vmatprep.subr.mxu0 0.0
      %1054 = vmatpush1.msra.mxu0 0.0
      %1055 = vmatprep.subr.mxu0 0.0
      %1056 = vmatpush1.msra.mxu0 0.0
      %1057 = vmatprep.subr.mxu0 0.0
      %1058 = vmatpush1.msra.mxu0 0.0
      %1059 = vmatprep.subr.mxu0 0.0
      %1060 = vmatpush1.msra.mxu0 0.0
      %1061 = vmatprep.subr.mxu0 0.0
      %1062 = vmatpush1.msra.mxu0 0.0
      %1063 = vmatprep.subr.mxu0 0.0
      %1064 = vmatpush1.msra.mxu0 0.0
      %1065 = vmatprep.subr.mxu0 0.0
      %1066 = vmatpush1.msra.mxu0 0.0
      %1067 = vmatprep.subr.mxu0 0.0
      %1068 = vmatpush1.msra.mxu0 0.0
      %1069 = vmatprep.mubr.f32.mxu0 0.0
      %1070 = vmatmul.mubr.f32.gmra.mrb[0].mxu0 %v982
      %v1071 = vpop.f32.mrb[0].mxu0
      %v1072 = vadd.f32 %v943, %v1071
      %v1073 = vpop.f32.mrb[0].mxu0
      %1074 = vmatprep.mubr.f32.mxu0 0.0
      %1075 = vmatmul.mubr.f32.gmra.mrb[0].mxu0 %v985
      %v1076 = vpop.f32.mrb[0].mxu0
      %v1077 = vadd.f32 %v948, %v1076
      %v1078 = vpop.f32.mrb[0].mxu0
      %1079 = vmatprep.mubr.f32.mxu0 0.0
      %1080 = vmatmul.mubr.f32.gmra.mrb[0].mxu0 %v988
      %v1081 = vpop.f32.mrb[0].mxu0
      %v1082 = vadd.f32 %v953, %v1081
      %v1083 = vpop.f32.mrb[0].mxu0
      %1084 = vmatprep.mubr.f32.mxu0 0.0
      %1085 = vmatmul.mubr.f32.gmra.mrb[0].mxu0 %v991
      %v1086 = vpop.f32.mrb[0].mxu0
      %v1087 = vadd.f32 %v958, %v1086
      %v1088 = vpop.f32.mrb[0].mxu0
      %1089 = vmatprep.mubr.f32.mxu0 0.0
      %1090 = vmatmul.mubr.f32.gmra.mrb[0].mxu0 %v994
      %v1091 = vpop.f32.mrb[0].mxu0
      %v1092 = vadd.f32 %v963, %v1091
      %v1093 = vpop.f32.mrb[0].mxu0
      %1094 = vmatprep.mubr.f32.mxu0 0.0
      %1095 = vmatmul.mubr.f32.gmra.mrb[0].mxu0 %v997
      %v1096 = vpop.f32.mrb[0].mxu0
      %v1097 = vadd.f32 %v968, %v1096
      %v1098 = vpop.f32.mrb[0].mxu0
      %1099 = vmatprep.mubr.f32.mxu0 0.0
      %1100 = vmatmul.mubr.f32.gmra.mrb[0].mxu0 %v1000
      %v1101 = vpop.f32.mrb[0].mxu0
      %v1102 = vadd.f32 %v973, %v1101
      %v1103 = vpop.f32.mrb[0].mxu0
      %1104 = vmatprep.mubr.f32.mxu0 0.0
      %1105 = vmatmul.mubr.f32.gmra.mrb[0].mxu0 %v1003
      %v1106 = vpop.f32.mrb[0].mxu0
      %v1107 = vadd.f32 %v978, %v1106
      %v1108 = vpop.f32.mrb[0].mxu0
      %1109 = vdwg.mxu0
      %s1110 = scalar_lea.vmem [#allocation2], 32
      %v1111 = vld [vmem:[%s1110] sm:$0xff]
      %v1112 = vld [vmem:[%s1110 + $0x10] sm:$0xff]
      %v1113 = vld [vmem:[%s1110 + $0x20] sm:$0xff]
      %v1114 = vld [vmem:[%s1110 + $0x30] sm:$0xff]
      %v1115 = vld [vmem:[%s1110 + $0x40] sm:$0xff]
      %v1116 = vld [vmem:[%s1110 + $0x50] sm:$0xff]
      %v1117 = vld [vmem:[%s1110 + $0x60] sm:$0xff]
      %v1118 = vld [vmem:[%s1110 + $0x70] sm:$0xff]
      %v1119 = vld [vmem:[%s1110 + $0x1] sm:$0xff]
      %v1120 = vld [vmem:[%s1110 + $0x11] sm:$0xff]
      %v1121 = vld [vmem:[%s1110 + $0x21] sm:$0xff]
      %v1122 = vld [vmem:[%s1110 + $0x31] sm:$0xff]
      %v1123 = vld [vmem:[%s1110 + $0x41] sm:$0xff]
      %v1124 = vld [vmem:[%s1110 + $0x51] sm:$0xff]
      %v1125 = vld [vmem:[%s1110 + $0x61] sm:$0xff]
      %v1126 = vld [vmem:[%s1110 + $0x71] sm:$0xff]
      %v1127 = vld [vmem:[%s1110 + $0x2] sm:$0xff]
      %v1128 = vld [vmem:[%s1110 + $0x12] sm:$0xff]
      %v1129 = vld [vmem:[%s1110 + $0x22] sm:$0xff]
      %v1130 = vld [vmem:[%s1110 + $0x32] sm:$0xff]
      %v1131 = vld [vmem:[%s1110 + $0x42] sm:$0xff]
      %v1132 = vld [vmem:[%s1110 + $0x52] sm:$0xff]
      %v1133 = vld [vmem:[%s1110 + $0x62] sm:$0xff]
      %v1134 = vld [vmem:[%s1110 + $0x72] sm:$0xff]
      %v1135 = vld [vmem:[%s1110 + $0x3] sm:$0xff]
      %v1136 = vld [vmem:[%s1110 + $0x13] sm:$0xff]
      %v1137 = vld [vmem:[%s1110 + $0x23] sm:$0xff]
      %v1138 = vld [vmem:[%s1110 + $0x33] sm:$0xff]
      %v1139 = vld [vmem:[%s1110 + $0x43] sm:$0xff]
      %v1140 = vld [vmem:[%s1110 + $0x53] sm:$0xff]
      %v1141 = vld [vmem:[%s1110 + $0x63] sm:$0xff]
      %v1142 = vld [vmem:[%s1110 + $0x73] sm:$0xff]
      %1151 = vrot.lane.b32.xlu0 %v1119, 16
      %v1152 = vpop.permute.xlu0 %1151
      %1153 = vrot.lane.b32.xlu0 %v1120, 16
      %v1154 = vpop.permute.xlu0 %1153
      %1155 = vrot.lane.b32.xlu0 %v1121, 16
      %v1156 = vpop.permute.xlu0 %1155
      %1157 = vrot.lane.b32.xlu0 %v1122, 16
      %v1158 = vpop.permute.xlu0 %1157
      %1159 = vrot.lane.b32.xlu0 %v1123, 16
      %v1160 = vpop.permute.xlu0 %1159
      %1161 = vrot.lane.b32.xlu0 %v1124, 16
      %v1162 = vpop.permute.xlu0 %1161
      %1163 = vrot.lane.b32.xlu0 %v1125, 16
      %v1164 = vpop.permute.xlu0 %1163
      %1165 = vrot.lane.b32.xlu0 %v1126, 16
      %v1166 = vpop.permute.xlu0 %1165
      %1183 = vrot.lane.b32.xlu0 %v1127, 32
      %v1184 = vpop.permute.xlu0 %1183
      %1185 = vrot.lane.b32.xlu0 %v1128, 32
      %v1186 = vpop.permute.xlu0 %1185
      %1187 = vrot.lane.b32.xlu0 %v1129, 32
      %v1188 = vpop.permute.xlu0 %1187
      %1189 = vrot.lane.b32.xlu0 %v1130, 32
      %v1190 = vpop.permute.xlu0 %1189
      %1191 = vrot.lane.b32.xlu0 %v1131, 32
      %v1192 = vpop.permute.xlu0 %1191
      %1193 = vrot.lane.b32.xlu0 %v1132, 32
      %v1194 = vpop.permute.xlu0 %1193
      %1195 = vrot.lane.b32.xlu0 %v1133, 32
      %v1196 = vpop.permute.xlu0 %1195
      %1197 = vrot.lane.b32.xlu0 %v1134, 32
      %v1198 = vpop.permute.xlu0 %1197
      %1215 = vrot.lane.b32.xlu0 %v1135, 48
      %v1216 = vpop.permute.xlu0 %1215
      %1217 = vrot.lane.b32.xlu0 %v1136, 48
      %v1218 = vpop.permute.xlu0 %1217
      %1219 = vrot.lane.b32.xlu0 %v1137, 48
      %v1220 = vpop.permute.xlu0 %1219
      %1221 = vrot.lane.b32.xlu0 %v1138, 48
      %v1222 = vpop.permute.xlu0 %1221
      %1223 = vrot.lane.b32.xlu0 %v1139, 48
      %v1224 = vpop.permute.xlu0 %1223
      %1225 = vrot.lane.b32.xlu0 %v1140, 48
      %v1226 = vpop.permute.xlu0 %1225
      %1227 = vrot.lane.b32.xlu0 %v1141, 48
      %v1228 = vpop.permute.xlu0 %1227
      %1229 = vrot.lane.b32.xlu0 %v1142, 48
      %v1230 = vpop.permute.xlu0 %1229
      %v1239 = vsel %vm503, %v1111, %v1152
      %v1240 = vsel %vm503, %v1112, %v1154
      %v1241 = vsel %vm503, %v1113, %v1156
      %v1242 = vsel %vm503, %v1114, %v1158
      %v1243 = vsel %vm503, %v1115, %v1160
      %v1244 = vsel %vm503, %v1116, %v1162
      %v1245 = vsel %vm503, %v1117, %v1164
      %v1246 = vsel %vm503, %v1118, %v1166
      %v1247 = vsel %vm663, %v1239, %v1184
      %v1248 = vsel %vm663, %v1240, %v1186
      %v1249 = vsel %vm663, %v1241, %v1188
      %v1250 = vsel %vm663, %v1242, %v1190
      %v1251 = vsel %vm663, %v1243, %v1192
      %v1252 = vsel %vm663, %v1244, %v1194
      %v1253 = vsel %vm663, %v1245, %v1196
      %v1254 = vsel %vm663, %v1246, %v1198
      %v1255 = vsel %vm672, %v1247, %v1216
      %v1256 = vsel %vm672, %v1248, %v1218
      %v1257 = vsel %vm672, %v1249, %v1220
      %v1258 = vsel %vm672, %v1250, %v1222
      %v1259 = vsel %vm672, %v1251, %v1224
      %v1260 = vsel %vm672, %v1252, %v1226
      %v1261 = vsel %vm672, %v1253, %v1228
      %v1262 = vsel %vm672, %v1254, %v1230
      %s1263 = scalar_lea.vmem %s4, 128
      %v1264 = vld [vmem:[%s1263] sm:$0xff]
      %v1265 = vld [vmem:[%s1263 + $0x8] sm:$0xff]
      %v1266 = vld [vmem:[%s1263 + $0x10] sm:$0xff]
      %v1267 = vld [vmem:[%s1263 + $0x18] sm:$0xff]
      %v1268 = vld [vmem:[%s1263 + $0x20] sm:$0xff]
      %v1269 = vld [vmem:[%s1263 + $0x28] sm:$0xff]
      %v1270 = vld [vmem:[%s1263 + $0x30] sm:$0xff]
      %v1271 = vld [vmem:[%s1263 + $0x38] sm:$0xff]
      %v1273 = vsel %vm851, %v1255, 0
      %v1276 = vsel %vm851, %v1256, 0
      %v1279 = vsel %vm851, %v1257, 0
      %v1282 = vsel %vm851, %v1258, 0
      %v1285 = vsel %vm851, %v1259, 0
      %v1288 = vsel %vm851, %v1260, 0
      %v1291 = vsel %vm851, %v1261, 0
      %v1294 = vsel %vm851, %v1262, 0
      %1296 = vmatprep.subr.mxu0 0.0
      %1297 = vmatpush1.msra.mxu0 %v1264
      %1298 = vmatprep.subr.mxu0 0.0
      %1299 = vmatpush1.msra.mxu0 %v1265
      %1300 = vmatprep.subr.mxu0 0.0
      %1301 = vmatpush1.msra.mxu0 %v1266
      %1302 = vmatprep.subr.mxu0 0.0
      %1303 = vmatpush1.msra.mxu0 %v1267
      %1304 = vmatprep.subr.mxu0 0.0
      %1305 = vmatpush1.msra.mxu0 %v1268
      %1306 = vmatprep.subr.mxu0 0.0
      %1307 = vmatpush1.msra.mxu0 %v1269
      %1308 = vmatprep.subr.mxu0 0.0
      %1309 = vmatpush1.msra.mxu0 %v1270
      %1310 = vmatprep.subr.mxu0 0.0
      %1311 = vmatpush1.msra.mxu0 %v1271
      %1312 = vmatprep.subr.mxu0 0.0
      %1313 = vmatpush1.msra.mxu0 0.0
      %1314 = vmatprep.subr.mxu0 0.0
      %1315 = vmatpush1.msra.mxu0 0.0
      %1316 = vmatprep.subr.mxu0 0.0
      %1317 = vmatpush1.msra.mxu0 0.0
      %1318 = vmatprep.subr.mxu0 0.0
      %1319 = vmatpush1.msra.mxu0 0.0
      %1320 = vmatprep.subr.mxu0 0.0
      %1321 = vmatpush1.msra.mxu0 0.0
      %1322 = vmatprep.subr.mxu0 0.0
      %1323 = vmatpush1.msra.mxu0 0.0
      %1324 = vmatprep.subr.mxu0 0.0
      %1325 = vmatpush1.msra.mxu0 0.0
      %1326 = vmatprep.subr.mxu0 0.0
      %1327 = vmatpush1.msra.mxu0 0.0
      %1328 = vmatprep.subr.mxu0 0.0
      %1329 = vmatpush1.msra.mxu0 0.0
      %1330 = vmatprep.subr.mxu0 0.0
      %1331 = vmatpush1.msra.mxu0 0.0
      %1332 = vmatprep.subr.mxu0 0.0
      %1333 = vmatpush1.msra.mxu0 0.0
      %1334 = vmatprep.subr.mxu0 0.0
      %1335 = vmatpush1.msra.mxu0 0.0
      %1336 = vmatprep.subr.mxu0 0.0
      %1337 = vmatpush1.msra.mxu0 0.0
      %1338 = vmatprep.subr.mxu0 0.0
      %1339 = vmatpush1.msra.mxu0 0.0
      %1340 = vmatprep.subr.mxu0 0.0
      %1341 = vmatpush1.msra.mxu0 0.0
      %1342 = vmatprep.subr.mxu0 0.0
      %1343 = vmatpush1.msra.mxu0 0.0
      %1344 = vmatprep.subr.mxu0 0.0
      %1345 = vmatpush1.msra.mxu0 0.0
      %1346 = vmatprep.subr.mxu0 0.0
      %1347 = vmatpush1.msra.mxu0 0.0
      %1348 = vmatprep.subr.mxu0 0.0
      %1349 = vmatpush1.msra.mxu0 0.0
      %1350 = vmatprep.subr.mxu0 0.0
      %1351 = vmatpush1.msra.mxu0 0.0
      %1352 = vmatprep.subr.mxu0 0.0
      %1353 = vmatpush1.msra.mxu0 0.0
      %1354 = vmatprep.subr.mxu0 0.0
      %1355 = vmatpush1.msra.mxu0 0.0
      %1356 = vmatprep.subr.mxu0 0.0
      %1357 = vmatpush1.msra.mxu0 0.0
      %1358 = vmatprep.subr.mxu0 0.0
      %1359 = vmatpush1.msra.mxu0 0.0
      %1360 = vmatprep.mubr.f32.mxu0 0.0
      %1361 = vmatmul.mubr.f32.gmra.mrb[0].mxu0 %v1273
      %v1362 = vpop.f32.mrb[0].mxu0
      %v1363 = vadd.f32 0.0, %v1362
      %v1364 = vpop.f32.mrb[0].mxu0
      %1365 = vmatprep.mubr.f32.mxu0 0.0
      %1366 = vmatmul.mubr.f32.gmra.mrb[0].mxu0 %v1276
      %v1367 = vpop.f32.mrb[0].mxu0
      %v1368 = vadd.f32 0.0, %v1367
      %v1369 = vpop.f32.mrb[0].mxu0
      %1370 = vmatprep.mubr.f32.mxu0 0.0
      %1371 = vmatmul.mubr.f32.gmra.mrb[0].mxu0 %v1279
      %v1372 = vpop.f32.mrb[0].mxu0
      %v1373 = vadd.f32 0.0, %v1372
      %v1374 = vpop.f32.mrb[0].mxu0
      %1375 = vmatprep.mubr.f32.mxu0 0.0
      %1376 = vmatmul.mubr.f32.gmra.mrb[0].mxu0 %v1282
      %v1377 = vpop.f32.mrb[0].mxu0
      %v1378 = vadd.f32 0.0, %v1377
      %v1379 = vpop.f32.mrb[0].mxu0
      %1380 = vmatprep.mubr.f32.mxu0 0.0
      %1381 = vmatmul.mubr.f32.gmra.mrb[0].mxu0 %v1285
      %v1382 = vpop.f32.mrb[0].mxu0
      %v1383 = vadd.f32 0.0, %v1382
      %v1384 = vpop.f32.mrb[0].mxu0
      %1385 = vmatprep.mubr.f32.mxu0 0.0
      %1386 = vmatmul.mubr.f32.gmra.mrb[0].mxu0 %v1288
      %v1387 = vpop.f32.mrb[0].mxu0
      %v1388 = vadd.f32 0.0, %v1387
      %v1389 = vpop.f32.mrb[0].mxu0
      %1390 = vmatprep.mubr.f32.mxu0 0.0
      %1391 = vmatmul.mubr.f32.gmra.mrb[0].mxu0 %v1291
      %v1392 = vpop.f32.mrb[0].mxu0
      %v1393 = vadd.f32 0.0, %v1392
      %v1394 = vpop.f32.mrb[0].mxu0
      %1395 = vmatprep.mubr.f32.mxu0 0.0
      %1396 = vmatmul.mubr.f32.gmra.mrb[0].mxu0 %v1294
      %v1397 = vpop.f32.mrb[0].mxu0
      %v1398 = vadd.f32 0.0, %v1397
      %v1399 = vpop.f32.mrb[0].mxu0
      %1400 = vdwg.mxu0
      %v1401 = vadd.f32 %v1072, %v1363
      %v1402 = vadd.f32 %v1077, %v1368
      %v1403 = vadd.f32 %v1082, %v1373
      %v1404 = vadd.f32 %v1087, %v1378
      %v1405 = vadd.f32 %v1092, %v1383
      %v1406 = vadd.f32 %v1097, %v1388
      %v1407 = vadd.f32 %v1102, %v1393
      %v1408 = vadd.f32 %v1107, %v1398
      %s1409 = scalar_lea.vmem [#allocation2], 48
      %v1410 = vld [vmem:[%s1409] sm:$0xff]
      %v1411 = vld [vmem:[%s1409 + $0x10] sm:$0xff]
      %v1412 = vld [vmem:[%s1409 + $0x20] sm:$0xff]
      %v1413 = vld [vmem:[%s1409 + $0x30] sm:$0xff]
      %v1414 = vld [vmem:[%s1409 + $0x40] sm:$0xff]
      %v1415 = vld [vmem:[%s1409 + $0x50] sm:$0xff]
      %v1416 = vld [vmem:[%s1409 + $0x60] sm:$0xff]
      %v1417 = vld [vmem:[%s1409 + $0x70] sm:$0xff]
      %v1418 = vld [vmem:[%s1409 + $0x1] sm:$0xff]
      %v1419 = vld [vmem:[%s1409 + $0x11] sm:$0xff]
      %v1420 = vld [vmem:[%s1409 + $0x21] sm:$0xff]
      %v1421 = vld [vmem:[%s1409 + $0x31] sm:$0xff]
      %v1422 = vld [vmem:[%s1409 + $0x41] sm:$0xff]
      %v1423 = vld [vmem:[%s1409 + $0x51] sm:$0xff]
      %v1424 = vld [vmem:[%s1409 + $0x61] sm:$0xff]
      %v1425 = vld [vmem:[%s1409 + $0x71] sm:$0xff]
      %v1426 = vld [vmem:[%s1409 + $0x2] sm:$0xff]
      %v1427 = vld [vmem:[%s1409 + $0x12] sm:$0xff]
      %v1428 = vld [vmem:[%s1409 + $0x22] sm:$0xff]
      %v1429 = vld [vmem:[%s1409 + $0x32] sm:$0xff]
      %v1430 = vld [vmem:[%s1409 + $0x42] sm:$0xff]
      %v1431 = vld [vmem:[%s1409 + $0x52] sm:$0xff]
      %v1432 = vld [vmem:[%s1409 + $0x62] sm:$0xff]
      %v1433 = vld [vmem:[%s1409 + $0x72] sm:$0xff]
      %v1434 = vld [vmem:[%s1409 + $0x3] sm:$0xff]
      %v1435 = vld [vmem:[%s1409 + $0x13] sm:$0xff]
      %v1436 = vld [vmem:[%s1409 + $0x23] sm:$0xff]
      %v1437 = vld [vmem:[%s1409 + $0x33] sm:$0xff]
      %v1438 = vld [vmem:[%s1409 + $0x43] sm:$0xff]
      %v1439 = vld [vmem:[%s1409 + $0x53] sm:$0xff]
      %v1440 = vld [vmem:[%s1409 + $0x63] sm:$0xff]
      %v1441 = vld [vmem:[%s1409 + $0x73] sm:$0xff]
      %1450 = vrot.lane.b32.xlu0 %v1418, 16
      %v1451 = vpop.permute.xlu0 %1450
      %1452 = vrot.lane.b32.xlu0 %v1419, 16
      %v1453 = vpop.permute.xlu0 %1452
      %1454 = vrot.lane.b32.xlu0 %v1420, 16
      %v1455 = vpop.permute.xlu0 %1454
      %1456 = vrot.lane.b32.xlu0 %v1421, 16
      %v1457 = vpop.permute.xlu0 %1456
      %1458 = vrot.lane.b32.xlu0 %v1422, 16
      %v1459 = vpop.permute.xlu0 %1458
      %1460 = vrot.lane.b32.xlu0 %v1423, 16
      %v1461 = vpop.permute.xlu0 %1460
      %1462 = vrot.lane.b32.xlu0 %v1424, 16
      %v1463 = vpop.permute.xlu0 %1462
      %1464 = vrot.lane.b32.xlu0 %v1425, 16
      %v1465 = vpop.permute.xlu0 %1464
      %1482 = vrot.lane.b32.xlu0 %v1426, 32
      %v1483 = vpop.permute.xlu0 %1482
      %1484 = vrot.lane.b32.xlu0 %v1427, 32
      %v1485 = vpop.permute.xlu0 %1484
      %1486 = vrot.lane.b32.xlu0 %v1428, 32
      %v1487 = vpop.permute.xlu0 %1486
      %1488 = vrot.lane.b32.xlu0 %v1429, 32
      %v1489 = vpop.permute.xlu0 %1488
      %1490 = vrot.lane.b32.xlu0 %v1430, 32
      %v1491 = vpop.permute.xlu0 %1490
      %1492 = vrot.lane.b32.xlu0 %v1431, 32
      %v1493 = vpop.permute.xlu0 %1492
      %1494 = vrot.lane.b32.xlu0 %v1432, 32
      %v1495 = vpop.permute.xlu0 %1494
      %1496 = vrot.lane.b32.xlu0 %v1433, 32
      %v1497 = vpop.permute.xlu0 %1496
      %1514 = vrot.lane.b32.xlu0 %v1434, 48
      %v1515 = vpop.permute.xlu0 %1514
      %1516 = vrot.lane.b32.xlu0 %v1435, 48
      %v1517 = vpop.permute.xlu0 %1516
      %1518 = vrot.lane.b32.xlu0 %v1436, 48
      %v1519 = vpop.permute.xlu0 %1518
      %1520 = vrot.lane.b32.xlu0 %v1437, 48
      %v1521 = vpop.permute.xlu0 %1520
      %1522 = vrot.lane.b32.xlu0 %v1438, 48
      %v1523 = vpop.permute.xlu0 %1522
      %1524 = vrot.lane.b32.xlu0 %v1439, 48
      %v1525 = vpop.permute.xlu0 %1524
      %1526 = vrot.lane.b32.xlu0 %v1440, 48
      %v1527 = vpop.permute.xlu0 %1526
      %1528 = vrot.lane.b32.xlu0 %v1441, 48
      %v1529 = vpop.permute.xlu0 %1528
      %v1538 = vsel %vm503, %v1410, %v1451
      %v1539 = vsel %vm503, %v1411, %v1453
      %v1540 = vsel %vm503, %v1412, %v1455
      %v1541 = vsel %vm503, %v1413, %v1457
      %v1542 = vsel %vm503, %v1414, %v1459
      %v1543 = vsel %vm503, %v1415, %v1461
      %v1544 = vsel %vm503, %v1416, %v1463
      %v1545 = vsel %vm503, %v1417, %v1465
      %v1546 = vsel %vm663, %v1538, %v1483
      %v1547 = vsel %vm663, %v1539, %v1485
      %v1548 = vsel %vm663, %v1540, %v1487
      %v1549 = vsel %vm663, %v1541, %v1489
      %v1550 = vsel %vm663, %v1542, %v1491
      %v1551 = vsel %vm663, %v1543, %v1493
      %v1552 = vsel %vm663, %v1544, %v1495
      %v1553 = vsel %vm663, %v1545, %v1497
      %v1554 = vsel %vm672, %v1546, %v1515
      %v1555 = vsel %vm672, %v1547, %v1517
      %v1556 = vsel %vm672, %v1548, %v1519
      %v1557 = vsel %vm672, %v1549, %v1521
      %v1558 = vsel %vm672, %v1550, %v1523
      %v1559 = vsel %vm672, %v1551, %v1525
      %v1560 = vsel %vm672, %v1552, %v1527
      %v1561 = vsel %vm672, %v1553, %v1529
      %s1562 = scalar_lea.vmem %s4, 192
      %v1563 = vld [vmem:[%s1562] sm:$0xff]
      %v1564 = vld [vmem:[%s1562 + $0x8] sm:$0xff]
      %v1565 = vld [vmem:[%s1562 + $0x10] sm:$0xff]
      %v1566 = vld [vmem:[%s1562 + $0x18] sm:$0xff]
      %v1567 = vld [vmem:[%s1562 + $0x20] sm:$0xff]
      %v1568 = vld [vmem:[%s1562 + $0x28] sm:$0xff]
      %v1569 = vld [vmem:[%s1562 + $0x30] sm:$0xff]
      %v1570 = vld [vmem:[%s1562 + $0x38] sm:$0xff]
      %v1572 = vsel %vm851, %v1554, 0
      %v1575 = vsel %vm851, %v1555, 0
      %v1578 = vsel %vm851, %v1556, 0
      %v1581 = vsel %vm851, %v1557, 0
      %v1584 = vsel %vm851, %v1558, 0
      %v1587 = vsel %vm851, %v1559, 0
      %v1590 = vsel %vm851, %v1560, 0
      %v1593 = vsel %vm851, %v1561, 0
      %1595 = vmatprep.subr.mxu0 0.0
      %1596 = vmatpush1.msra.mxu0 %v1563
      %1597 = vmatprep.subr.mxu0 0.0
      %1598 = vmatpush1.msra.mxu0 %v1564
      %1599 = vmatprep.subr.mxu0 0.0
      %1600 = vmatpush1.msra.mxu0 %v1565
      %1601 = vmatprep.subr.mxu0 0.0
      %1602 = vmatpush1.msra.mxu0 %v1566
      %1603 = vmatprep.subr.mxu0 0.0
      %1604 = vmatpush1.msra.mxu0 %v1567
      %1605 = vmatprep.subr.mxu0 0.0
      %1606 = vmatpush1.msra.mxu0 %v1568
      %1607 = vmatprep.subr.mxu0 0.0
      %1608 = vmatpush1.msra.mxu0 %v1569
      %1609 = vmatprep.subr.mxu0 0.0
      %1610 = vmatpush1.msra.mxu0 %v1570
      %1611 = vmatprep.subr.mxu0 0.0
      %1612 = vmatpush1.msra.mxu0 0.0
      %1613 = vmatprep.subr.mxu0 0.0
      %1614 = vmatpush1.msra.mxu0 0.0
      %1615 = vmatprep.subr.mxu0 0.0
      %1616 = vmatpush1.msra.mxu0 0.0
      %1617 = vmatprep.subr.mxu0 0.0
      %1618 = vmatpush1.msra.mxu0 0.0
      %1619 = vmatprep.subr.mxu0 0.0
      %1620 = vmatpush1.msra.mxu0 0.0
      %1621 = vmatprep.subr.mxu0 0.0
      %1622 = vmatpush1.msra.mxu0 0.0
      %1623 = vmatprep.subr.mxu0 0.0
      %1624 = vmatpush1.msra.mxu0 0.0
      %1625 = vmatprep.subr.mxu0 0.0
      %1626 = vmatpush1.msra.mxu0 0.0
      %1627 = vmatprep.subr.mxu0 0.0
      %1628 = vmatpush1.msra.mxu0 0.0
      %1629 = vmatprep.subr.mxu0 0.0
      %1630 = vmatpush1.msra.mxu0 0.0
      %1631 = vmatprep.subr.mxu0 0.0
      %1632 = vmatpush1.msra.mxu0 0.0
      %1633 = vmatprep.subr.mxu0 0.0
      %1634 = vmatpush1.msra.mxu0 0.0
      %1635 = vmatprep.subr.mxu0 0.0
      %1636 = vmatpush1.msra.mxu0 0.0
      %1637 = vmatprep.subr.mxu0 0.0
      %1638 = vmatpush1.msra.mxu0 0.0
      %1639 = vmatprep.subr.mxu0 0.0
      %1640 = vmatpush1.msra.mxu0 0.0
      %1641 = vmatprep.subr.mxu0 0.0
      %1642 = vmatpush1.msra.mxu0 0.0
      %1643 = vmatprep.subr.mxu0 0.0
      %1644 = vmatpush1.msra.mxu0 0.0
      %1645 = vmatprep.subr.mxu0 0.0
      %1646 = vmatpush1.msra.mxu0 0.0
      %1647 = vmatprep.subr.mxu0 0.0
      %1648 = vmatpush1.msra.mxu0 0.0
      %1649 = vmatprep.subr.mxu0 0.0
      %1650 = vmatpush1.msra.mxu0 0.0
      %1651 = vmatprep.subr.mxu0 0.0
      %1652 = vmatpush1.msra.mxu0 0.0
      %1653 = vmatprep.subr.mxu0 0.0
      %1654 = vmatpush1.msra.mxu0 0.0
      %1655 = vmatprep.subr.mxu0 0.0
      %1656 = vmatpush1.msra.mxu0 0.0
      %1657 = vmatprep.subr.mxu0 0.0
      %1658 = vmatpush1.msra.mxu0 0.0
      %1659 = vmatprep.mubr.f32.mxu0 0.0
      %1660 = vmatmul.mubr.f32.gmra.mrb[0].mxu0 %v1572
      %v1661 = vpop.f32.mrb[0].mxu0
      %v1662 = vadd.f32 0.0, %v1661
      %v1663 = vpop.f32.mrb[0].mxu0
      %1664 = vmatprep.mubr.f32.mxu0 0.0
      %1665 = vmatmul.mubr.f32.gmra.mrb[0].mxu0 %v1575
      %v1666 = vpop.f32.mrb[0].mxu0
      %v1667 = vadd.f32 0.0, %v1666
      %v1668 = vpop.f32.mrb[0].mxu0
      %1669 = vmatprep.mubr.f32.mxu0 0.0
      %1670 = vmatmul.mubr.f32.gmra.mrb[0].mxu0 %v1578
      %v1671 = vpop.f32.mrb[0].mxu0
      %v1672 = vadd.f32 0.0, %v1671
      %v1673 = vpop.f32.mrb[0].mxu0
      %1674 = vmatprep.mubr.f32.mxu0 0.0
      %1675 = vmatmul.mubr.f32.gmra.mrb[0].mxu0 %v1581
      %v1676 = vpop.f32.mrb[0].mxu0
      %v1677 = vadd.f32 0.0, %v1676
      %v1678 = vpop.f32.mrb[0].mxu0
      %1679 = vmatprep.mubr.f32.mxu0 0.0
      %1680 = vmatmul.mubr.f32.gmra.mrb[0].mxu0 %v1584
      %v1681 = vpop.f32.mrb[0].mxu0
      %v1682 = vadd.f32 0.0, %v1681
      %v1683 = vpop.f32.mrb[0].mxu0
      %1684 = vmatprep.mubr.f32.mxu0 0.0
      %1685 = vmatmul.mubr.f32.gmra.mrb[0].mxu0 %v1587
      %v1686 = vpop.f32.mrb[0].mxu0
      %v1687 = vadd.f32 0.0, %v1686
      %v1688 = vpop.f32.mrb[0].mxu0
      %1689 = vmatprep.mubr.f32.mxu0 0.0
      %1690 = vmatmul.mubr.f32.gmra.mrb[0].mxu0 %v1590
      %v1691 = vpop.f32.mrb[0].mxu0
      %v1692 = vadd.f32 0.0, %v1691
      %v1693 = vpop.f32.mrb[0].mxu0
      %1694 = vmatprep.mubr.f32.mxu0 0.0
      %1695 = vmatmul.mubr.f32.gmra.mrb[0].mxu0 %v1593
      %v1696 = vpop.f32.mrb[0].mxu0
      %v1697 = vadd.f32 0.0, %v1696
      %v1698 = vpop.f32.mrb[0].mxu0
      %1699 = vdwg.mxu0
      %v1700 = vadd.f32 %v1401, %v1662
      %v1701 = vadd.f32 %v1402, %v1667
      %v1702 = vadd.f32 %v1403, %v1672
      %v1703 = vadd.f32 %v1404, %v1677
      %v1704 = vadd.f32 %v1405, %v1682
      %v1705 = vadd.f32 %v1406, %v1687
      %v1706 = vadd.f32 %v1407, %v1692
      %v1707 = vadd.f32 %v1408, %v1697
      %v1708 = vld [vmem:[%s5] sm:$0x1]
      %v1710 = vlaneseq
      %v1711 = vshrl.u32 %v1710, 7
      %v1712 = vsub.s32 0, %v1711
      %v1713 = vrot.slane %v1708, %v1712
      %v1715 = vmul.f32 %v1700, %v1713
      %v1716 = vmul.f32 %v1701, %v1713
      %v1717 = vmul.f32 %v1702, %v1713
      %v1718 = vmul.f32 %v1703, %v1713
      %v1719 = vmul.f32 %v1704, %v1713
      %v1720 = vmul.f32 %v1705, %v1713
      %v1721 = vmul.f32 %v1706, %v1713
      %v1722 = vmul.f32 %v1707, %v1713
      %v1723 = vld [vmem:[%s6] sm:$0x1]
      %v1725 = vlaneseq
      %v1726 = vshrl.u32 %v1725, 7
      %v1727 = vsub.s32 0, %v1726
      %v1728 = vrot.slane %v1723, %v1727
      %v1730 = vadd.f32 %v1715, %v1728
      %v1731 = vadd.f32 %v1716, %v1728
      %v1732 = vadd.f32 %v1717, %v1728
      %v1733 = vadd.f32 %v1718, %v1728
      %v1734 = vadd.f32 %v1719, %v1728
      %v1735 = vadd.f32 %v1720, %v1728
      %v1736 = vadd.f32 %v1721, %v1728
      %v1737 = vadd.f32 %v1722, %v1728
      %v1738 = vmax.f32 %v1730, 0.0
      %v1739 = vmax.f32 %v1731, 0.0
      %v1740 = vmax.f32 %v1732, 0.0
      %v1741 = vmax.f32 %v1733, 0.0
      %v1742 = vmax.f32 %v1734, 0.0
      %v1743 = vmax.f32 %v1735, 0.0
      %v1744 = vmax.f32 %v1736, 0.0
      %v1745 = vmax.f32 %v1737, 0.0
      %s1746 = scalar_lea.vmem [#allocation3], 16
      %vm1747 = vcmask 64512
      %1748 = vst.msk [vmem:[%s1746 + $0x1] sm:$0xff] %vm1747, %v1738
      %1749 = vst.msk [vmem:[%s1746 + $0x11] sm:$0xff] %vm1747, %v1739
      %1750 = vst.msk [vmem:[%s1746 + $0x21] sm:$0xff] %vm1747, %v1740
      %1751 = vst.msk [vmem:[%s1746 + $0x31] sm:$0xff] %vm1747, %v1741
      %1752 = vst.msk [vmem:[%s1746 + $0x41] sm:$0xff] %vm1747, %v1742
      %1753 = vst.msk [vmem:[%s1746 + $0x51] sm:$0xff] %vm1747, %v1743
      %1754 = vst.msk [vmem:[%s1746 + $0x61] sm:$0xff] %vm1747, %v1744
      %1755 = vst.msk [vmem:[%s1746 + $0x71] sm:$0xff] %vm1747, %v1745
      %v1756 = vld [vmem:[#allocation3] sm:$0xff]
      %v1757 = vld [vmem:[#allocation3 + $0x10] sm:$0xff]
      %v1758 = vld [vmem:[#allocation3 + $0x20] sm:$0xff]
      %v1759 = vld [vmem:[#allocation3 + $0x30] sm:$0xff]
      %v1760 = vld [vmem:[#allocation3 + $0x40] sm:$0xff]
      %v1761 = vld [vmem:[#allocation3 + $0x50] sm:$0xff]
      %v1762 = vld [vmem:[#allocation3 + $0x60] sm:$0xff]
      %v1763 = vld [vmem:[#allocation3 + $0x70] sm:$0xff]
      %v1764 = vld [vmem:[#allocation3 + $0x1] sm:$0xff]
      %v1765 = vld [vmem:[#allocation3 + $0x11] sm:$0xff]
      %v1766 = vld [vmem:[#allocation3 + $0x21] sm:$0xff]
      %v1767 = vld [vmem:[#allocation3 + $0x31] sm:$0xff]
      %v1768 = vld [vmem:[#allocation3 + $0x41] sm:$0xff]
      %v1769 = vld [vmem:[#allocation3 + $0x51] sm:$0xff]
      %v1770 = vld [vmem:[#allocation3 + $0x61] sm:$0xff]
      %v1771 = vld [vmem:[#allocation3 + $0x71] sm:$0xff]
      %v1772 = vld [vmem:[#allocation3 + $0x2] sm:$0xff]
      %v1773 = vld [vmem:[#allocation3 + $0x12] sm:$0xff]
      %v1774 = vld [vmem:[#allocation3 + $0x22] sm:$0xff]
      %v1775 = vld [vmem:[#allocation3 + $0x32] sm:$0xff]
      %v1776 = vld [vmem:[#allocation3 + $0x42] sm:$0xff]
      %v1777 = vld [vmem:[#allocation3 + $0x52] sm:$0xff]
      %v1778 = vld [vmem:[#allocation3 + $0x62] sm:$0xff]
      %v1779 = vld [vmem:[#allocation3 + $0x72] sm:$0xff]
      %1788 = vrot.lane.b32.xlu0 %v1764, 8
      %v1789 = vpop.permute.xlu0 %1788
      %1790 = vrot.lane.b32.xlu0 %v1765, 8
      %v1791 = vpop.permute.xlu0 %1790
      %1792 = vrot.lane.b32.xlu0 %v1766, 8
      %v1793 = vpop.permute.xlu0 %1792
      %1794 = vrot.lane.b32.xlu0 %v1767, 8
      %v1795 = vpop.permute.xlu0 %1794
      %1796 = vrot.lane.b32.xlu0 %v1768, 8
      %v1797 = vpop.permute.xlu0 %1796
      %1798 = vrot.lane.b32.xlu0 %v1769, 8
      %v1799 = vpop.permute.xlu0 %1798
      %1800 = vrot.lane.b32.xlu0 %v1770, 8
      %v1801 = vpop.permute.xlu0 %1800
      %1802 = vrot.lane.b32.xlu0 %v1771, 8
      %v1803 = vpop.permute.xlu0 %1802
      %1820 = vrot.lane.b32.xlu0 %v1772, 16
      %v1821 = vpop.permute.xlu0 %1820
      %1822 = vrot.lane.b32.xlu0 %v1773, 16
      %v1823 = vpop.permute.xlu0 %1822
      %1824 = vrot.lane.b32.xlu0 %v1774, 16
      %v1825 = vpop.permute.xlu0 %1824
      %1826 = vrot.lane.b32.xlu0 %v1775, 16
      %v1827 = vpop.permute.xlu0 %1826
      %1828 = vrot.lane.b32.xlu0 %v1776, 16
      %v1829 = vpop.permute.xlu0 %1828
      %1830 = vrot.lane.b32.xlu0 %v1777, 16
      %v1831 = vpop.permute.xlu0 %1830
      %1832 = vrot.lane.b32.xlu0 %v1778, 16
      %v1833 = vpop.permute.xlu0 %1832
      %1834 = vrot.lane.b32.xlu0 %v1779, 16
      %v1835 = vpop.permute.xlu0 %1834
      %v1844 = vsel %vm1747, %v1756, %v1789
      %v1845 = vsel %vm1747, %v1757, %v1791
      %v1846 = vsel %vm1747, %v1758, %v1793
      %v1847 = vsel %vm1747, %v1759, %v1795
      %v1848 = vsel %vm1747, %v1760, %v1797
      %v1849 = vsel %vm1747, %v1761, %v1799
      %v1850 = vsel %vm1747, %v1762, %v1801
      %v1851 = vsel %vm1747, %v1763, %v1803
      %v1852 = vsel %vm503, %v1844, %v1821
      %v1853 = vsel %vm503, %v1845, %v1823
      %v1854 = vsel %vm503, %v1846, %v1825
      %v1855 = vsel %vm503, %v1847, %v1827
      %v1856 = vsel %vm503, %v1848, %v1829
      %v1857 = vsel %vm503, %v1849, %v1831
      %v1858 = vsel %vm503, %v1850, %v1833
      %v1859 = vsel %vm503, %v1851, %v1835
      %v1860 = vld [vmem:[%s7] sm:$0xff]
      %v1861 = vld [vmem:[%s7 + $0x8] sm:$0xff]
      %v1862 = vld [vmem:[%s7 + $0x10] sm:$0xff]
      %v1863 = vld [vmem:[%s1746] sm:$0xff]
      %v1864 = vld [vmem:[%s1746 + $0x10] sm:$0xff]
      %v1865 = vld [vmem:[%s1746 + $0x20] sm:$0xff]
      %v1866 = vld [vmem:[%s1746 + $0x30] sm:$0xff]
      %v1867 = vld [vmem:[%s1746 + $0x40] sm:$0xff]
      %v1868 = vld [vmem:[%s1746 + $0x50] sm:$0xff]
      %v1869 = vld [vmem:[%s1746 + $0x60] sm:$0xff]
      %v1870 = vld [vmem:[%s1746 + $0x70] sm:$0xff]
      %v1871 = vld [vmem:[%s1746 + $0x1] sm:$0xff]
      %v1872 = vld [vmem:[%s1746 + $0x11] sm:$0xff]
      %v1873 = vld [vmem:[%s1746 + $0x21] sm:$0xff]
      %v1874 = vld [vmem:[%s1746 + $0x31] sm:$0xff]
      %v1875 = vld [vmem:[%s1746 + $0x41] sm:$0xff]
      %v1876 = vld [vmem:[%s1746 + $0x51] sm:$0xff]
      %v1877 = vld [vmem:[%s1746 + $0x61] sm:$0xff]
      %v1878 = vld [vmem:[%s1746 + $0x71] sm:$0xff]
      %v1879 = vld [vmem:[%s1746 + $0x2] sm:$0xff]
      %v1880 = vld [vmem:[%s1746 + $0x12] sm:$0xff]
      %v1881 = vld [vmem:[%s1746 + $0x22] sm:$0xff]
      %v1882 = vld [vmem:[%s1746 + $0x32] sm:$0xff]
      %v1883 = vld [vmem:[%s1746 + $0x42] sm:$0xff]
      %v1884 = vld [vmem:[%s1746 + $0x52] sm:$0xff]
      %v1885 = vld [vmem:[%s1746 + $0x62] sm:$0xff]
      %v1886 = vld [vmem:[%s1746 + $0x72] sm:$0xff]
      %1895 = vrot.lane.b32.xlu0 %v1871, 8
      %v1896 = vpop.permute.xlu0 %1895
      %1897 = vrot.lane.b32.xlu0 %v1872, 8
      %v1898 = vpop.permute.xlu0 %1897
      %1899 = vrot.lane.b32.xlu0 %v1873, 8
      %v1900 = vpop.permute.xlu0 %1899
      %1901 = vrot.lane.b32.xlu0 %v1874, 8
      %v1902 = vpop.permute.xlu0 %1901
      %1903 = vrot.lane.b32.xlu0 %v1875, 8
      %v1904 = vpop.permute.xlu0 %1903
      %1905 = vrot.lane.b32.xlu0 %v1876, 8
      %v1906 = vpop.permute.xlu0 %1905
      %1907 = vrot.lane.b32.xlu0 %v1877, 8
      %v1908 = vpop.permute.xlu0 %1907
      %1909 = vrot.lane.b32.xlu0 %v1878, 8
      %v1910 = vpop.permute.xlu0 %1909
      %1927 = vrot.lane.b32.xlu0 %v1879, 16
      %v1928 = vpop.permute.xlu0 %1927
      %1929 = vrot.lane.b32.xlu0 %v1880, 16
      %v1930 = vpop.permute.xlu0 %1929
      %1931 = vrot.lane.b32.xlu0 %v1881, 16
      %v1932 = vpop.permute.xlu0 %1931
      %1933 = vrot.lane.b32.xlu0 %v1882, 16
      %v1934 = vpop.permute.xlu0 %1933
      %1935 = vrot.lane.b32.xlu0 %v1883, 16
      %v1936 = vpop.permute.xlu0 %1935
      %1937 = vrot.lane.b32.xlu0 %v1884, 16
      %v1938 = vpop.permute.xlu0 %1937
      %1939 = vrot.lane.b32.xlu0 %v1885, 16
      %v1940 = vpop.permute.xlu0 %1939
      %1941 = vrot.lane.b32.xlu0 %v1886, 16
      %v1942 = vpop.permute.xlu0 %1941
      %v1951 = vsel %vm1747, %v1863, %v1896
      %v1952 = vsel %vm1747, %v1864, %v1898
      %v1953 = vsel %vm1747, %v1865, %v1900
      %v1954 = vsel %vm1747, %v1866, %v1902
      %v1955 = vsel %vm1747, %v1867, %v1904
      %v1956 = vsel %vm1747, %v1868, %v1906
      %v1957 = vsel %vm1747, %v1869, %v1908
      %v1958 = vsel %vm1747, %v1870, %v1910
      %v1959 = vsel %vm503, %v1951, %v1928
      %v1960 = vsel %vm503, %v1952, %v1930
      %v1961 = vsel %vm503, %v1953, %v1932
      %v1962 = vsel %vm503, %v1954, %v1934
      %v1963 = vsel %vm503, %v1955, %v1936
      %v1964 = vsel %vm503, %v1956, %v1938
      %v1965 = vsel %vm503, %v1957, %v1940
      %v1966 = vsel %vm503, %v1958, %v1942
      %s1967 = scalar_lea.vmem %s7, 24
      %v1968 = vld [vmem:[%s1967] sm:$0xff]
      %v1969 = vld [vmem:[%s1967 + $0x8] sm:$0xff]
      %v1970 = vld [vmem:[%s1967 + $0x10] sm:$0xff]
      %vm1971 = vcmask 195584
      %v1973 = vsel %vm1971, %v1959, 0
      %v1976 = vsel %vm1971, %v1960, 0
      %v1979 = vsel %vm1971, %v1961, 0
      %v1982 = vsel %vm1971, %v1962, 0
      %v1985 = vsel %vm1971, %v1963, 0
      %v1988 = vsel %vm1971, %v1964, 0
      %v1991 = vsel %vm1971, %v1965, 0
      %v1994 = vsel %vm1971, %v1966, 0
      %1996 = vmatprep.subr.mxu0 0.0
      %1997 = vmatpush1.msra.mxu0 %v1968
      %1998 = vmatprep.subr.mxu0 0.0
      %1999 = vmatpush1.msra.mxu0 %v1969
      %2000 = vmatprep.subr.mxu0 0.0
      %2001 = vmatpush1.msra.mxu0 %v1970
      %2002 = vmatprep.subr.mxu0 0.0
      %2003 = vmatpush1.msra.mxu0 0.0
      %2004 = vmatprep.subr.mxu0 0.0
      %2005 = vmatpush1.msra.mxu0 0.0
      %2006 = vmatprep.subr.mxu0 0.0
      %2007 = vmatpush1.msra.mxu0 0.0
      %2008 = vmatprep.subr.mxu0 0.0
      %2009 = vmatpush1.msra.mxu0 0.0
      %2010 = vmatprep.subr.mxu0 0.0
      %2011 = vmatpush1.msra.mxu0 0.0
      %2012 = vmatprep.subr.mxu0 0.0
      %2013 = vmatpush1.msra.mxu0 0.0
      %2014 = vmatprep.subr.mxu0 0.0
      %2015 = vmatpush1.msra.mxu0 0.0
      %2016 = vmatprep.subr.mxu0 0.0
      %2017 = vmatpush1.msra.mxu0 0.0
      %2018 = vmatprep.subr.mxu0 0.0
      %2019 = vmatpush1.msra.mxu0 0.0
      %2020 = vmatprep.subr.mxu0 0.0
      %2021 = vmatpush1.msra.mxu0 0.0
      %2022 = vmatprep.subr.mxu0 0.0
      %2023 = vmatpush1.msra.mxu0 0.0
      %2024 = vmatprep.subr.mxu0 0.0
      %2025 = vmatpush1.msra.mxu0 0.0
      %2026 = vmatprep.subr.mxu0 0.0
      %2027 = vmatpush1.msra.mxu0 0.0
      %2028 = vmatprep.subr.mxu0 0.0
      %2029 = vmatpush1.msra.mxu0 0.0
      %2030 = vmatprep.subr.mxu0 0.0
      %2031 = vmatpush1.msra.mxu0 0.0
      %2032 = vmatprep.subr.mxu0 0.0
      %2033 = vmatpush1.msra.mxu0 0.0
      %2034 = vmatprep.subr.mxu0 0.0
      %2035 = vmatpush1.msra.mxu0 0.0
      %2036 = vmatprep.subr.mxu0 0.0
      %2037 = vmatpush1.msra.mxu0 0.0
      %2038 = vmatprep.subr.mxu0 0.0
      %2039 = vmatpush1.msra.mxu0 0.0
      %2040 = vmatprep.subr.mxu0 0.0
      %2041 = vmatpush1.msra.mxu0 0.0
      %2042 = vmatprep.subr.mxu0 0.0
      %2043 = vmatpush1.msra.mxu0 0.0
      %2044 = vmatprep.subr.mxu0 0.0
      %2045 = vmatpush1.msra.mxu0 0.0
      %2046 = vmatprep.subr.mxu0 0.0
      %2047 = vmatpush1.msra.mxu0 0.0
      %2048 = vmatprep.subr.mxu0 0.0
      %2049 = vmatpush1.msra.mxu0 0.0
      %2050 = vmatprep.subr.mxu0 0.0
      %2051 = vmatpush1.msra.mxu0 0.0
      %2052 = vmatprep.subr.mxu0 0.0
      %2053 = vmatpush1.msra.mxu0 0.0
      %2054 = vmatprep.subr.mxu0 0.0
      %2055 = vmatpush1.msra.mxu0 0.0
      %2056 = vmatprep.subr.mxu0 0.0
      %2057 = vmatpush1.msra.mxu0 0.0
      %2058 = vmatprep.subr.mxu0 0.0
      %2059 = vmatpush1.msra.mxu0 0.0
      %2060 = vmatprep.mubr.f32.mxu0 0.0
      %2061 = vmatmul.mubr.f32.gmra.mrb[0].mxu0 %v1973
      %v2062 = vpop.f32.mrb[0].mxu0
      %v2063 = vadd.f32 0.0, %v2062
      %v2064 = vpop.f32.mrb[0].mxu0
      %2065 = vmatprep.mubr.f32.mxu0 0.0
      %2066 = vmatmul.mubr.f32.gmra.mrb[0].mxu0 %v1976
      %v2067 = vpop.f32.mrb[0].mxu0
      %v2068 = vadd.f32 0.0, %v2067
      %v2069 = vpop.f32.mrb[0].mxu0
      %2070 = vmatprep.mubr.f32.mxu0 0.0
      %2071 = vmatmul.mubr.f32.gmra.mrb[0].mxu0 %v1979
      %v2072 = vpop.f32.mrb[0].mxu0
      %v2073 = vadd.f32 0.0, %v2072
      %v2074 = vpop.f32.mrb[0].mxu0
      %2075 = vmatprep.mubr.f32.mxu0 0.0
      %2076 = vmatmul.mubr.f32.gmra.mrb[0].mxu0 %v1982
      %v2077 = vpop.f32.mrb[0].mxu0
      %v2078 = vadd.f32 0.0, %v2077
      %v2079 = vpop.f32.mrb[0].mxu0
      %2080 = vmatprep.mubr.f32.mxu0 0.0
      %2081 = vmatmul.mubr.f32.gmra.mrb[0].mxu0 %v1985
      %v2082 = vpop.f32.mrb[0].mxu0
      %v2083 = vadd.f32 0.0, %v2082
      %v2084 = vpop.f32.mrb[0].mxu0
      %2085 = vmatprep.mubr.f32.mxu0 0.0
      %2086 = vmatmul.mubr.f32.gmra.mrb[0].mxu0 %v1988
      %v2087 = vpop.f32.mrb[0].mxu0
      %v2088 = vadd.f32 0.0, %v2087
      %v2089 = vpop.f32.mrb[0].mxu0
      %2090 = vmatprep.mubr.f32.mxu0 0.0
      %2091 = vmatmul.mubr.f32.gmra.mrb[0].mxu0 %v1991
      %v2092 = vpop.f32.mrb[0].mxu0
      %v2093 = vadd.f32 0.0, %v2092
      %v2094 = vpop.f32.mrb[0].mxu0
      %2095 = vmatprep.mubr.f32.mxu0 0.0
      %2096 = vmatmul.mubr.f32.gmra.mrb[0].mxu0 %v1994
      %v2097 = vpop.f32.mrb[0].mxu0
      %v2098 = vadd.f32 0.0, %v2097
      %v2099 = vpop.f32.mrb[0].mxu0
      %2100 = vdwg.mxu0
      %v2102 = vsel %vm1971, %v1852, 0
      %v2105 = vsel %vm1971, %v1853, 0
      %v2108 = vsel %vm1971, %v1854, 0
      %v2111 = vsel %vm1971, %v1855, 0
      %v2114 = vsel %vm1971, %v1856, 0
      %v2117 = vsel %vm1971, %v1857, 0
      %v2120 = vsel %vm1971, %v1858, 0
      %v2123 = vsel %vm1971, %v1859, 0
      %2125 = vmatprep.subr.mxu0 0.0
      %2126 = vmatpush1.msra.mxu0 %v1860
      %2127 = vmatprep.subr.mxu0 0.0
      %2128 = vmatpush1.msra.mxu0 %v1861
      %2129 = vmatprep.subr.mxu0 0.0
      %2130 = vmatpush1.msra.mxu0 %v1862
      %2131 = vmatprep.subr.mxu0 0.0
      %2132 = vmatpush1.msra.mxu0 0.0
      %2133 = vmatprep.subr.mxu0 0.0
      %2134 = vmatpush1.msra.mxu0 0.0
      %2135 = vmatprep.subr.mxu0 0.0
      %2136 = vmatpush1.msra.mxu0 0.0
      %2137 = vmatprep.subr.mxu0 0.0
      %2138 = vmatpush1.msra.mxu0 0.0
      %2139 = vmatprep.subr.mxu0 0.0
      %2140 = vmatpush1.msra.mxu0 0.0
      %2141 = vmatprep.subr.mxu0 0.0
      %2142 = vmatpush1.msra.mxu0 0.0
      %2143 = vmatprep.subr.mxu0 0.0
      %2144 = vmatpush1.msra.mxu0 0.0
      %2145 = vmatprep.subr.mxu0 0.0
      %2146 = vmatpush1.msra.mxu0 0.0
      %2147 = vmatprep.subr.mxu0 0.0
      %2148 = vmatpush1.msra.mxu0 0.0
      %2149 = vmatprep.subr.mxu0 0.0
      %2150 = vmatpush1.msra.mxu0 0.0
      %2151 = vmatprep.subr.mxu0 0.0
      %2152 = vmatpush1.msra.mxu0 0.0
      %2153 = vmatprep.subr.mxu0 0.0
      %2154 = vmatpush1.msra.mxu0 0.0
      %2155 = vmatprep.subr.mxu0 0.0
      %2156 = vmatpush1.msra.mxu0 0.0
      %2157 = vmatprep.subr.mxu0 0.0
      %2158 = vmatpush1.msra.mxu0 0.0
      %2159 = vmatprep.subr.mxu0 0.0
      %2160 = vmatpush1.msra.mxu0 0.0
      %2161 = vmatprep.subr.mxu0 0.0
      %2162 = vmatpush1.msra.mxu0 0.0
      %2163 = vmatprep.subr.mxu0 0.0
      %2164 = vmatpush1.msra.mxu0 0.0
      %2165 = vmatprep.subr.mxu0 0.0
      %2166 = vmatpush1.msra.mxu0 0.0
      %2167 = vmatprep.subr.mxu0 0.0
      %2168 = vmatpush1.msra.mxu0 0.0
      %2169 = vmatprep.subr.mxu0 0.0
      %2170 = vmatpush1.msra.mxu0 0.0
      %2171 = vmatprep.subr.mxu0 0.0
      %2172 = vmatpush1.msra.mxu0 0.0
      %2173 = vmatprep.subr.mxu0 0.0
      %2174 = vmatpush1.msra.mxu0 0.0
      %2175 = vmatprep.subr.mxu0 0.0
      %2176 = vmatpush1.msra.mxu0 0.0
      %2177 = vmatprep.subr.mxu0 0.0
      %2178 = vmatpush1.msra.mxu0 0.0
      %2179 = vmatprep.subr.mxu0 0.0
      %2180 = vmatpush1.msra.mxu0 0.0
      %2181 = vmatprep.subr.mxu0 0.0
      %2182 = vmatpush1.msra.mxu0 0.0
      %2183 = vmatprep.subr.mxu0 0.0
      %2184 = vmatpush1.msra.mxu0 0.0
      %2185 = vmatprep.subr.mxu0 0.0
      %2186 = vmatpush1.msra.mxu0 0.0
      %2187 = vmatprep.subr.mxu0 0.0
      %2188 = vmatpush1.msra.mxu0 0.0
      %2189 = vmatprep.mubr.f32.mxu0 0.0
      %2190 = vmatmul.mubr.f32.gmra.mrb[0].mxu0 %v2102
      %v2191 = vpop.f32.mrb[0].mxu0
      %v2192 = vadd.f32 %v2063, %v2191
      %v2193 = vpop.f32.mrb[0].mxu0
      %2194 = vmatprep.mubr.f32.mxu0 0.0
      %2195 = vmatmul.mubr.f32.gmra.mrb[0].mxu0 %v2105
      %v2196 = vpop.f32.mrb[0].mxu0
      %v2197 = vadd.f32 %v2068, %v2196
      %v2198 = vpop.f32.mrb[0].mxu0
      %2199 = vmatprep.mubr.f32.mxu0 0.0
      %2200 = vmatmul.mubr.f32.gmra.mrb[0].mxu0 %v2108
      %v2201 = vpop.f32.mrb[0].mxu0
      %v2202 = vadd.f32 %v2073, %v2201
      %v2203 = vpop.f32.mrb[0].mxu0
      %2204 = vmatprep.mubr.f32.mxu0 0.0
      %2205 = vmatmul.mubr.f32.gmra.mrb[0].mxu0 %v2111
      %v2206 = vpop.f32.mrb[0].mxu0
      %v2207 = vadd.f32 %v2078, %v2206
      %v2208 = vpop.f32.mrb[0].mxu0
      %2209 = vmatprep.mubr.f32.mxu0 0.0
      %2210 = vmatmul.mubr.f32.gmra.mrb[0].mxu0 %v2114
      %v2211 = vpop.f32.mrb[0].mxu0
      %v2212 = vadd.f32 %v2083, %v2211
      %v2213 = vpop.f32.mrb[0].mxu0
      %2214 = vmatprep.mubr.f32.mxu0 0.0
      %2215 = vmatmul.mubr.f32.gmra.mrb[0].mxu0 %v2117
      %v2216 = vpop.f32.mrb[0].mxu0
      %v2217 = vadd.f32 %v2088, %v2216
      %v2218 = vpop.f32.mrb[0].mxu0
      %2219 = vmatprep.mubr.f32.mxu0 0.0
      %2220 = vmatmul.mubr.f32.gmra.mrb[0].mxu0 %v2120
      %v2221 = vpop.f32.mrb[0].mxu0
      %v2222 = vadd.f32 %v2093, %v2221
      %v2223 = vpop.f32.mrb[0].mxu0
      %2224 = vmatprep.mubr.f32.mxu0 0.0
      %2225 = vmatmul.mubr.f32.gmra.mrb[0].mxu0 %v2123
      %v2226 = vpop.f32.mrb[0].mxu0
      %v2227 = vadd.f32 %v2098, %v2226
      %v2228 = vpop.f32.mrb[0].mxu0
      %2229 = vdwg.mxu0
      %s2230 = scalar_lea.vmem [#allocation3], 32
      %v2231 = vld [vmem:[%s2230] sm:$0xff]
      %v2232 = vld [vmem:[%s2230 + $0x10] sm:$0xff]
      %v2233 = vld [vmem:[%s2230 + $0x20] sm:$0xff]
      %v2234 = vld [vmem:[%s2230 + $0x30] sm:$0xff]
      %v2235 = vld [vmem:[%s2230 + $0x40] sm:$0xff]
      %v2236 = vld [vmem:[%s2230 + $0x50] sm:$0xff]
      %v2237 = vld [vmem:[%s2230 + $0x60] sm:$0xff]
      %v2238 = vld [vmem:[%s2230 + $0x70] sm:$0xff]
      %v2239 = vld [vmem:[%s2230 + $0x1] sm:$0xff]
      %v2240 = vld [vmem:[%s2230 + $0x11] sm:$0xff]
      %v2241 = vld [vmem:[%s2230 + $0x21] sm:$0xff]
      %v2242 = vld [vmem:[%s2230 + $0x31] sm:$0xff]
      %v2243 = vld [vmem:[%s2230 + $0x41] sm:$0xff]
      %v2244 = vld [vmem:[%s2230 + $0x51] sm:$0xff]
      %v2245 = vld [vmem:[%s2230 + $0x61] sm:$0xff]
      %v2246 = vld [vmem:[%s2230 + $0x71] sm:$0xff]
      %v2247 = vld [vmem:[%s2230 + $0x2] sm:$0xff]
      %v2248 = vld [vmem:[%s2230 + $0x12] sm:$0xff]
      %v2249 = vld [vmem:[%s2230 + $0x22] sm:$0xff]
      %v2250 = vld [vmem:[%s2230 + $0x32] sm:$0xff]
      %v2251 = vld [vmem:[%s2230 + $0x42] sm:$0xff]
      %v2252 = vld [vmem:[%s2230 + $0x52] sm:$0xff]
      %v2253 = vld [vmem:[%s2230 + $0x62] sm:$0xff]
      %v2254 = vld [vmem:[%s2230 + $0x72] sm:$0xff]
      %2263 = vrot.lane.b32.xlu0 %v2239, 8
      %v2264 = vpop.permute.xlu0 %2263
      %2265 = vrot.lane.b32.xlu0 %v2240, 8
      %v2266 = vpop.permute.xlu0 %2265
      %2267 = vrot.lane.b32.xlu0 %v2241, 8
      %v2268 = vpop.permute.xlu0 %2267
      %2269 = vrot.lane.b32.xlu0 %v2242, 8
      %v2270 = vpop.permute.xlu0 %2269
      %2271 = vrot.lane.b32.xlu0 %v2243, 8
      %v2272 = vpop.permute.xlu0 %2271
      %2273 = vrot.lane.b32.xlu0 %v2244, 8
      %v2274 = vpop.permute.xlu0 %2273
      %2275 = vrot.lane.b32.xlu0 %v2245, 8
      %v2276 = vpop.permute.xlu0 %2275
      %2277 = vrot.lane.b32.xlu0 %v2246, 8
      %v2278 = vpop.permute.xlu0 %2277
      %2295 = vrot.lane.b32.xlu0 %v2247, 16
      %v2296 = vpop.permute.xlu0 %2295
      %2297 = vrot.lane.b32.xlu0 %v2248, 16
      %v2298 = vpop.permute.xlu0 %2297
      %2299 = vrot.lane.b32.xlu0 %v2249, 16
      %v2300 = vpop.permute.xlu0 %2299
      %2301 = vrot.lane.b32.xlu0 %v2250, 16
      %v2302 = vpop.permute.xlu0 %2301
      %2303 = vrot.lane.b32.xlu0 %v2251, 16
      %v2304 = vpop.permute.xlu0 %2303
      %2305 = vrot.lane.b32.xlu0 %v2252, 16
      %v2306 = vpop.permute.xlu0 %2305
      %2307 = vrot.lane.b32.xlu0 %v2253, 16
      %v2308 = vpop.permute.xlu0 %2307
      %2309 = vrot.lane.b32.xlu0 %v2254, 16
      %v2310 = vpop.permute.xlu0 %2309
      %v2319 = vsel %vm1747, %v2231, %v2264
      %v2320 = vsel %vm1747, %v2232, %v2266
      %v2321 = vsel %vm1747, %v2233, %v2268
      %v2322 = vsel %vm1747, %v2234, %v2270
      %v2323 = vsel %vm1747, %v2235, %v2272
      %v2324 = vsel %vm1747, %v2236, %v2274
      %v2325 = vsel %vm1747, %v2237, %v2276
      %v2326 = vsel %vm1747, %v2238, %v2278
      %v2327 = vsel %vm503, %v2319, %v2296
      %v2328 = vsel %vm503, %v2320, %v2298
      %v2329 = vsel %vm503, %v2321, %v2300
      %v2330 = vsel %vm503, %v2322, %v2302
      %v2331 = vsel %vm503, %v2323, %v2304
      %v2332 = vsel %vm503, %v2324, %v2306
      %v2333 = vsel %vm503, %v2325, %v2308
      %v2334 = vsel %vm503, %v2326, %v2310
      %s2335 = scalar_lea.vmem %s7, 48
      %v2336 = vld [vmem:[%s2335] sm:$0xff]
      %v2337 = vld [vmem:[%s2335 + $0x8] sm:$0xff]
      %v2338 = vld [vmem:[%s2335 + $0x10] sm:$0xff]
      %v2340 = vsel %vm1971, %v2327, 0
      %v2343 = vsel %vm1971, %v2328, 0
      %v2346 = vsel %vm1971, %v2329, 0
      %v2349 = vsel %vm1971, %v2330, 0
      %v2352 = vsel %vm1971, %v2331, 0
      %v2355 = vsel %vm1971, %v2332, 0
      %v2358 = vsel %vm1971, %v2333, 0
      %v2361 = vsel %vm1971, %v2334, 0
      %2363 = vmatprep.subr.mxu0 0.0
      %2364 = vmatpush1.msra.mxu0 %v2336
      %2365 = vmatprep.subr.mxu0 0.0
      %2366 = vmatpush1.msra.mxu0 %v2337
      %2367 = vmatprep.subr.mxu0 0.0
      %2368 = vmatpush1.msra.mxu0 %v2338
      %2369 = vmatprep.subr.mxu0 0.0
      %2370 = vmatpush1.msra.mxu0 0.0
      %2371 = vmatprep.subr.mxu0 0.0
      %2372 = vmatpush1.msra.mxu0 0.0
      %2373 = vmatprep.subr.mxu0 0.0
      %2374 = vmatpush1.msra.mxu0 0.0
      %2375 = vmatprep.subr.mxu0 0.0
      %2376 = vmatpush1.msra.mxu0 0.0
      %2377 = vmatprep.subr.mxu0 0.0
      %2378 = vmatpush1.msra.mxu0 0.0
      %2379 = vmatprep.subr.mxu0 0.0
      %2380 = vmatpush1.msra.mxu0 0.0
      %2381 = vmatprep.subr.mxu0 0.0
      %2382 = vmatpush1.msra.mxu0 0.0
      %2383 = vmatprep.subr.mxu0 0.0
      %2384 = vmatpush1.msra.mxu0 0.0
      %2385 = vmatprep.subr.mxu0 0.0
      %2386 = vmatpush1.msra.mxu0 0.0
      %2387 = vmatprep.subr.mxu0 0.0
      %2388 = vmatpush1.msra.mxu0 0.0
      %2389 = vmatprep.subr.mxu0 0.0
      %2390 = vmatpush1.msra.mxu0 0.0
      %2391 = vmatprep.subr.mxu0 0.0
      %2392 = vmatpush1.msra.mxu0 0.0
      %2393 = vmatprep.subr.mxu0 0.0
      %2394 = vmatpush1.msra.mxu0 0.0
      %2395 = vmatprep.subr.mxu0 0.0
      %2396 = vmatpush1.msra.mxu0 0.0
      %2397 = vmatprep.subr.mxu0 0.0
      %2398 = vmatpush1.msra.mxu0 0.0
      %2399 = vmatprep.subr.mxu0 0.0
      %2400 = vmatpush1.msra.mxu0 0.0
      %2401 = vmatprep.subr.mxu0 0.0
      %2402 = vmatpush1.msra.mxu0 0.0
      %2403 = vmatprep.subr.mxu0 0.0
      %2404 = vmatpush1.msra.mxu0 0.0
      %2405 = vmatprep.subr.mxu0 0.0
      %2406 = vmatpush1.msra.mxu0 0.0
      %2407 = vmatprep.subr.mxu0 0.0
      %2408 = vmatpush1.msra.mxu0 0.0
      %2409 = vmatprep.subr.mxu0 0.0
      %2410 = vmatpush1.msra.mxu0 0.0
      %2411 = vmatprep.subr.mxu0 0.0
      %2412 = vmatpush1.msra.mxu0 0.0
      %2413 = vmatprep.subr.mxu0 0.0
      %2414 = vmatpush1.msra.mxu0 0.0
      %2415 = vmatprep.subr.mxu0 0.0
      %2416 = vmatpush1.msra.mxu0 0.0
      %2417 = vmatprep.subr.mxu0 0.0
      %2418 = vmatpush1.msra.mxu0 0.0
      %2419 = vmatprep.subr.mxu0 0.0
      %2420 = vmatpush1.msra.mxu0 0.0
      %2421 = vmatprep.subr.mxu0 0.0
      %2422 = vmatpush1.msra.mxu0 0.0
      %2423 = vmatprep.subr.mxu0 0.0
      %2424 = vmatpush1.msra.mxu0 0.0
      %2425 = vmatprep.subr.mxu0 0.0
      %2426 = vmatpush1.msra.mxu0 0.0
      %2427 = vmatprep.mubr.f32.mxu0 0.0
      %2428 = vmatmul.mubr.f32.gmra.mrb[0].mxu0 %v2340
      %v2429 = vpop.f32.mrb[0].mxu0
      %v2430 = vadd.f32 0.0, %v2429
      %v2431 = vpop.f32.mrb[0].mxu0
      %2432 = vmatprep.mubr.f32.mxu0 0.0
      %2433 = vmatmul.mubr.f32.gmra.mrb[0].mxu0 %v2343
      %v2434 = vpop.f32.mrb[0].mxu0
      %v2435 = vadd.f32 0.0, %v2434
      %v2436 = vpop.f32.mrb[0].mxu0
      %2437 = vmatprep.mubr.f32.mxu0 0.0
      %2438 = vmatmul.mubr.f32.gmra.mrb[0].mxu0 %v2346
      %v2439 = vpop.f32.mrb[0].mxu0
      %v2440 = vadd.f32 0.0, %v2439
      %v2441 = vpop.f32.mrb[0].mxu0
      %2442 = vmatprep.mubr.f32.mxu0 0.0
      %2443 = vmatmul.mubr.f32.gmra.mrb[0].mxu0 %v2349
      %v2444 = vpop.f32.mrb[0].mxu0
      %v2445 = vadd.f32 0.0, %v2444
      %v2446 = vpop.f32.mrb[0].mxu0
      %2447 = vmatprep.mubr.f32.mxu0 0.0
      %2448 = vmatmul.mubr.f32.gmra.mrb[0].mxu0 %v2352
      %v2449 = vpop.f32.mrb[0].mxu0
      %v2450 = vadd.f32 0.0, %v2449
      %v2451 = vpop.f32.mrb[0].mxu0
      %2452 = vmatprep.mubr.f32.mxu0 0.0
      %2453 = vmatmul.mubr.f32.gmra.mrb[0].mxu0 %v2355
      %v2454 = vpop.f32.mrb[0].mxu0
      %v2455 = vadd.f32 0.0, %v2454
      %v2456 = vpop.f32.mrb[0].mxu0
      %2457 = vmatprep.mubr.f32.mxu0 0.0
      %2458 = vmatmul.mubr.f32.gmra.mrb[0].mxu0 %v2358
      %v2459 = vpop.f32.mrb[0].mxu0
      %v2460 = vadd.f32 0.0, %v2459
      %v2461 = vpop.f32.mrb[0].mxu0
      %2462 = vmatprep.mubr.f32.mxu0 0.0
      %2463 = vmatmul.mubr.f32.gmra.mrb[0].mxu0 %v2361
      %v2464 = vpop.f32.mrb[0].mxu0
      %v2465 = vadd.f32 0.0, %v2464
      %v2466 = vpop.f32.mrb[0].mxu0
      %2467 = vdwg.mxu0
      %v2468 = vadd.f32 %v2192, %v2430
      %v2469 = vadd.f32 %v2197, %v2435
      %v2470 = vadd.f32 %v2202, %v2440
      %v2471 = vadd.f32 %v2207, %v2445
      %v2472 = vadd.f32 %v2212, %v2450
      %v2473 = vadd.f32 %v2217, %v2455
      %v2474 = vadd.f32 %v2222, %v2460
      %v2475 = vadd.f32 %v2227, %v2465
      %v2476 = vld [vmem:[%s689 + $0x1] sm:$0xff]
      %v2477 = vld [vmem:[%s689 + $0x11] sm:$0xff]
      %v2478 = vld [vmem:[%s689 + $0x21] sm:$0xff]
      %v2479 = vld [vmem:[%s689 + $0x31] sm:$0xff]
      %v2480 = vld [vmem:[%s689 + $0x41] sm:$0xff]
      %v2481 = vld [vmem:[%s689 + $0x51] sm:$0xff]
      %v2482 = vld [vmem:[%s689 + $0x61] sm:$0xff]
      %v2483 = vld [vmem:[%s689 + $0x71] sm:$0xff]
      %v2484 = vld [vmem:[%s8] sm:$0xff]
      %v2485 = vld [vmem:[%s8 + $0x8] sm:$0xff]
      %v2487 = vsel %vm503, %v2476, 0
      %v2490 = vsel %vm503, %v2477, 0
      %v2493 = vsel %vm503, %v2478, 0
      %v2496 = vsel %vm503, %v2479, 0
      %v2499 = vsel %vm503, %v2480, 0
      %v2502 = vsel %vm503, %v2481, 0
      %v2505 = vsel %vm503, %v2482, 0
      %v2508 = vsel %vm503, %v2483, 0
      %2510 = vmatprep.subr.mxu0 0.0
      %2511 = vmatpush1.msra.mxu0 %v2484
      %2512 = vmatprep.subr.mxu0 0.0
      %2513 = vmatpush1.msra.mxu0 %v2485
      %2514 = vmatprep.subr.mxu0 0.0
      %2515 = vmatpush1.msra.mxu0 0.0
      %2516 = vmatprep.subr.mxu0 0.0
      %2517 = vmatpush1.msra.mxu0 0.0
      %2518 = vmatprep.subr.mxu0 0.0
      %2519 = vmatpush1.msra.mxu0 0.0
      %2520 = vmatprep.subr.mxu0 0.0
      %2521 = vmatpush1.msra.mxu0 0.0
      %2522 = vmatprep.subr.mxu0 0.0
      %2523 = vmatpush1.msra.mxu0 0.0
      %2524 = vmatprep.subr.mxu0 0.0
      %2525 = vmatpush1.msra.mxu0 0.0
      %2526 = vmatprep.subr.mxu0 0.0
      %2527 = vmatpush1.msra.mxu0 0.0
      %2528 = vmatprep.subr.mxu0 0.0
      %2529 = vmatpush1.msra.mxu0 0.0
      %2530 = vmatprep.subr.mxu0 0.0
      %2531 = vmatpush1.msra.mxu0 0.0
      %2532 = vmatprep.subr.mxu0 0.0
      %2533 = vmatpush1.msra.mxu0 0.0
      %2534 = vmatprep.subr.mxu0 0.0
      %2535 = vmatpush1.msra.mxu0 0.0
      %2536 = vmatprep.subr.mxu0 0.0
      %2537 = vmatpush1.msra.mxu0 0.0
      %2538 = vmatprep.subr.mxu0 0.0
      %2539 = vmatpush1.msra.mxu0 0.0
      %2540 = vmatprep.subr.mxu0 0.0
      %2541 = vmatpush1.msra.mxu0 0.0
      %2542 = vmatprep.subr.mxu0 0.0
      %2543 = vmatpush1.msra.mxu0 0.0
      %2544 = vmatprep.subr.mxu0 0.0
      %2545 = vmatpush1.msra.mxu0 0.0
      %2546 = vmatprep.subr.mxu0 0.0
      %2547 = vmatpush1.msra.mxu0 0.0
      %2548 = vmatprep.subr.mxu0 0.0
      %2549 = vmatpush1.msra.mxu0 0.0
      %2550 = vmatprep.subr.mxu0 0.0
      %2551 = vmatpush1.msra.mxu0 0.0
      %2552 = vmatprep.subr.mxu0 0.0
      %2553 = vmatpush1.msra.mxu0 0.0
      %2554 = vmatprep.subr.mxu0 0.0
      %2555 = vmatpush1.msra.mxu0 0.0
      %2556 = vmatprep.subr.mxu0 0.0
      %2557 = vmatpush1.msra.mxu0 0.0
      %2558 = vmatprep.subr.mxu0 0.0
      %2559 = vmatpush1.msra.mxu0 0.0
      %2560 = vmatprep.subr.mxu0 0.0
      %2561 = vmatpush1.msra.mxu0 0.0
      %2562 = vmatprep.subr.mxu0 0.0
      %2563 = vmatpush1.msra.mxu0 0.0
      %2564 = vmatprep.subr.mxu0 0.0
      %2565 = vmatpush1.msra.mxu0 0.0
      %2566 = vmatprep.subr.mxu0 0.0
      %2567 = vmatpush1.msra.mxu0 0.0
      %2568 = vmatprep.subr.mxu0 0.0
      %2569 = vmatpush1.msra.mxu0 0.0
      %2570 = vmatprep.subr.mxu0 0.0
      %2571 = vmatpush1.msra.mxu0 0.0
      %2572 = vmatprep.subr.mxu0 0.0
      %2573 = vmatpush1.msra.mxu0 0.0
      %2574 = vmatprep.mubr.f32.mxu0 0.0
      %2575 = vmatmul.mubr.f32.gmra.mrb[0].mxu0 %v2487
      %v2576 = vpop.f32.mrb[0].mxu0
      %v2577 = vadd.f32 0.0, %v2576
      %v2578 = vpop.f32.mrb[0].mxu0
      %2579 = vmatprep.mubr.f32.mxu0 0.0
      %2580 = vmatmul.mubr.f32.gmra.mrb[0].mxu0 %v2490
      %v2581 = vpop.f32.mrb[0].mxu0
      %v2582 = vadd.f32 0.0, %v2581
      %v2583 = vpop.f32.mrb[0].mxu0
      %2584 = vmatprep.mubr.f32.mxu0 0.0
      %2585 = vmatmul.mubr.f32.gmra.mrb[0].mxu0 %v2493
      %v2586 = vpop.f32.mrb[0].mxu0
      %v2587 = vadd.f32 0.0, %v2586
      %v2588 = vpop.f32.mrb[0].mxu0
      %2589 = vmatprep.mubr.f32.mxu0 0.0
      %2590 = vmatmul.mubr.f32.gmra.mrb[0].mxu0 %v2496
      %v2591 = vpop.f32.mrb[0].mxu0
      %v2592 = vadd.f32 0.0, %v2591
      %v2593 = vpop.f32.mrb[0].mxu0
      %2594 = vmatprep.mubr.f32.mxu0 0.0
      %2595 = vmatmul.mubr.f32.gmra.mrb[0].mxu0 %v2499
      %v2596 = vpop.f32.mrb[0].mxu0
      %v2597 = vadd.f32 0.0, %v2596
      %v2598 = vpop.f32.mrb[0].mxu0
      %2599 = vmatprep.mubr.f32.mxu0 0.0
      %2600 = vmatmul.mubr.f32.gmra.mrb[0].mxu0 %v2502
      %v2601 = vpop.f32.mrb[0].mxu0
      %v2602 = vadd.f32 0.0, %v2601
      %v2603 = vpop.f32.mrb[0].mxu0
      %2604 = vmatprep.mubr.f32.mxu0 0.0
      %2605 = vmatmul.mubr.f32.gmra.mrb[0].mxu0 %v2505
      %v2606 = vpop.f32.mrb[0].mxu0
      %v2607 = vadd.f32 0.0, %v2606
      %v2608 = vpop.f32.mrb[0].mxu0
      %2609 = vmatprep.mubr.f32.mxu0 0.0
      %2610 = vmatmul.mubr.f32.gmra.mrb[0].mxu0 %v2508
      %v2611 = vpop.f32.mrb[0].mxu0
      %v2612 = vadd.f32 0.0, %v2611
      %v2613 = vpop.f32.mrb[0].mxu0
      %2614 = vdwg.mxu0
      %v2615 = vadd.f32 %v2468, %v2577
      %v2616 = vadd.f32 %v2469, %v2582
      %v2617 = vadd.f32 %v2470, %v2587
      %v2618 = vadd.f32 %v2471, %v2592
      %v2619 = vadd.f32 %v2472, %v2597
      %v2620 = vadd.f32 %v2473, %v2602
      %v2621 = vadd.f32 %v2474, %v2607
      %v2622 = vadd.f32 %v2475, %v2612
      %2623 = vxpose.xlu0.b32.start [1/16] %v2615, 128
      %2624 = vxpose.xlu0.b32.cont [2/16] %v2616, 128
      %2625 = vxpose.xlu0.b32.cont [3/16] %v2617, 128
      %2626 = vxpose.xlu0.b32.cont [4/16] %v2618, 128
      %2627 = vxpose.xlu0.b32.cont [5/16] %v2619, 128
      %2628 = vxpose.xlu0.b32.cont [6/16] %v2620, 128
      %2629 = vxpose.xlu0.b32.cont [7/16] %v2621, 128
      %2630 = vxpose.xlu0.b32.cont [8/16] %v2622, 128
      %2631 = vxpose.xlu0.b32.cont [9/16] 0.0, 128
      %2632 = vxpose.xlu0.b32.cont [10/16] 0.0, 128
      %2633 = vxpose.xlu0.b32.cont [11/16] 0.0, 128
      %2634 = vxpose.xlu0.b32.cont [12/16] 0.0, 128
      %2635 = vxpose.xlu0.b32.cont [13/16] 0.0, 128
      %2636 = vxpose.xlu0.b32.cont [14/16] 0.0, 128
      %2637 = vxpose.xlu0.b32.cont [15/16] 0.0, 128
      %2638 = vxpose.xlu0.b32.end [16/16] 0.0, 128
      %v2639 = vpop.trf.xlu0
      %v2640 = vpop.trf.xlu0
      %v2641 = vpop.trf.xlu0
      %v2642 = vpop.trf.xlu0
      %v2643 = vpop.trf.xlu0
      %v2644 = vpop.trf.xlu0
      %v2645 = vpop.trf.xlu0
      %v2646 = vpop.trf.xlu0
      %v2647 = vpop.trf.xlu0
      %v2648 = vpop.trf.xlu0
      %v2649 = vpop.trf.xlu0
      %v2650 = vpop.trf.xlu0
      %v2651 = vpop.trf.xlu0
      %v2652 = vpop.trf.xlu0
      %v2653 = vpop.trf.xlu0
      %v2654 = vpop.trf.xlu0
      %2655 = vst.msk [vmem:[%s330] sm:$0xff] %vm851, %v2639
      %vm2656 = vcmask 1048064
      %2657 = vst.msk [vmem:[%s330] sm:$0xff] %vm2656, 0.0
      %p2658 = scmp.lt.s32.totalorder %s20, 1
      %s2659 = scalar_select %p2658, %s20, 1
      %s2660 = smul.addr %s2659, 8
      %s2661 = scalar_lea.vmem %s9, %s2660
      // Predicated region
      $region61: #{random_basic_block20_forward.1} parent=55 // pred_check
        %p2662 = pneg %p232
      $region62: #{random_basic_block20_forward.1} parent=55 // pred_check_branch
        %2664 = sbr.rel (%p2662) target = $region64
      $region63: #{random_basic_block20_forward.1} parent=55 // pred_region
        _
      $region64: #{random_basic_block20_forward.1} parent=55 // pred_fallthru
        _
    $region56: #{random_basic_block20_forward.1} parent=5 // pred_fallthru
      _
    %p2665 = scmp.le.s32.totalorder 2, %s15
    // Predicated region
    $region65: #{random_basic_block20_forward.1} parent=5 // pred_check
      %p2666 = pneg %p2665
    $region66: #{random_basic_block20_forward.1} parent=5 // pred_check_branch
      %2668 = sbr.rel (%p2666) target = $region68
    $region67: #{random_basic_block20_forward.1} parent=5 // pred_region
      %s2669 = ssub.s32 %s15, 2
      // Predicated region
      $region69: #{random_basic_block20_forward.1} parent=67 // pred_check
        %p2670 = pneg %p238
      $region70: #{random_basic_block20_forward.1} parent=67 // pred_check_branch
        %2672 = sbr.rel (%p2670) target = $region72
      $region71: #{random_basic_block20_forward.1} parent=67 // pred_region
        %p2673 = scmp.lt.s32.totalorder %s21, 1
        %s2674 = scalar_select %p2673, %s21, 1
        %s2675 = smul.addr %s2674, 8
        %s2676 = scalar_lea.vmem %s9, %s2675
      $region72: #{random_basic_block20_forward.1} parent=67 // pred_fallthru
        _
    $region68: #{random_basic_block20_forward.1} parent=5 // pred_fallthru
      _
  $region6: #{random_basic_block20_forward.1} parent=0 // loop_footer
    %s19 = sadd.s32 1, %s15
  $region7: #{random_basic_block20_forward.1} parent=0 // loop_footer_branch
    %14 = sbr.rel target = $region3
  $region8: #{random_basic_block20_forward.1} parent=0 // loop_exit
    _

</llo_original>
